<compile_context>
chip_gen: v5e
topology: v5e:2x2
jax: 0.10.0
libtpu: 0.0.40
codegen_flags: <defaults>
</compile_context>

<pallas_src>
import functools
import math

import jax
import jax.numpy as jnp
from jax import lax
from jax.experimental import pallas as pl
from jax.experimental.pallas import tpu as pltpu


def _round_up(x, m):
    return (x + m - 1) // m * m


def _pick_row_tile(H, W, TC, budget_elems=8 * 1024):
    """Largest divisor of H whose f32 accumulator (rt*W*TC) stays ~<= 8 vregs."""
    best = 1
    for rt in range(1, H + 1):
        if H % rt == 0 and rt * W * TC <= budget_elems:
            best = rt
    return best


def _peg_dwconv_kernel(x_ref, w_ref, b_ref, o_ref, xp_ref,
                       *, H, W, k, pad, lpad, Hp, Wp_al, RT):
    """Depthwise k x k conv ('same' zero padding) for one (batch, channel-tile).

    x_ref : (H, W, TC)        input image tile (batch dim squeezed)
    w_ref : (k*k, TC)         per-channel taps, row t = dh*k + dw (center tap has +1)
    b_ref : (1, TC)           bias (seeds the accumulator)
    o_ref : (H, W, TC)        output
    xp_ref: (Hp, Wp_al, TC)   zero-padded staging scratch (VMEM)
    """
    TC = o_ref.shape[-1]
    zdt = xp_ref.dtype

    # ---- build the zero-padded image in the VMEM staging scratch -------------
    # Border strips are rewritten every grid step so megacore sharding is safe.
    if pad > 0:
        xp_ref[0:pad, :, :] = jnp.zeros((pad, Wp_al, TC), zdt)               # top
        xp_ref[pad + H:Hp, :, :] = jnp.zeros((Hp - pad - H, Wp_al, TC), zdt)  # bottom
        xp_ref[pad:pad + H, 0:lpad, :] = jnp.zeros((H, lpad, TC), zdt)       # left
    rpad = Wp_al - lpad - W
    if rpad > 0:
        xp_ref[pad:pad + H, lpad + W:Wp_al, :] = jnp.zeros((H, rpad, TC), zdt)  # right
    # Interior copy: destination column offset `lpad` is a multiple of 8 -> aligned.
    xp_ref[pad:pad + H, lpad:lpad + W, :] = x_ref[...]

    # ---- hoisted per-invocation values ---------------------------------------
    w = w_ref[...].astype(jnp.float32)                                        # (k*k, TC)
    acc0 = jnp.broadcast_to(
        b_ref[...].astype(jnp.float32).reshape(1, 1, TC), (RT, W, TC))        # bias seed
    col_base = lpad - pad

    # ---- one RT-row tile at a time: acc stays in registers across all taps ---
    def row_tile(h0):
        acc = acc0
        for dh in range(k):                 # static tap loops (fully unrolled)
            for dw in range(k):
                tap = xp_ref[pl.ds(h0 + dh, RT),
                             pl.ds(col_base + dw, W), :].astype(jnp.float32)
                acc = acc + tap * w[dh * k + dw]
        o_ref[pl.ds(h0, RT), :, :] = acc.astype(o_ref.dtype)

    n_iters = H // RT
    if n_iters == 1:
        row_tile(0)
    else:
        def body(r, carry):
            row_tile(r * RT)
            return carry
        lax.fori_loop(0, n_iters, body, 0, unroll=(n_iters <= 4))


def peg_forward(x, weight_kkc, bias_c, *, k=7, channel_tile=128):
    """PEG forward.  x: (B, N, C).  weight_kkc: (k, k, C).  bias_c: (C,)."""
    B, N, C = x.shape
    H = int(math.ceil(math.sqrt(N)))
    W = H
    add_length = H * W - N
    pad = k // 2

    # Pad channels to a multiple of 128 so lanes are fully dense (no-op when
    # C is already 128-aligned, which is the common transformer case).
    LANES = 128
    Cp = _round_up(C, LANES)
    if Cp != C:
        x = jnp.pad(x, ((0, 0), (0, 0), (0, Cp - C)))
        weight_kkc = jnp.pad(weight_kkc, ((0, 0), (0, 0), (0, Cp - C)))
        bias_c = jnp.pad(bias_c, ((0, Cp - C),))

    # Wrap-pad the token sequence to a full H*W image (single XLA pass; see TODO).
    if add_length > 0:
        x_seq = jnp.concatenate([x, x[:, :add_length, :]], axis=1)
    else:
        x_seq = x
    x_img = x_seq.reshape(B, H, W, Cp)                # NHWC, channels on lanes

    TC = min(channel_tile, Cp)                        # Cp is a multiple of 128
    n_ct = Cp // TC

    lpad = _round_up(pad, 8) if pad > 0 else 0        # aligned left padding columns
    Hp = H + 2 * pad
    Wp_al = max(_round_up(lpad + W + pad, 8), 8)
    RT = _pick_row_tile(H, W, TC)

    # Fold the residual (identity) into the center tap.
    w2d = weight_kkc.reshape(k * k, Cp)
    w2d = w2d.at[pad * k + pad, :].add(1.0)
    bias2d = bias_c.reshape(1, Cp)

    kernel = functools.partial(_peg_dwconv_kernel, H=H, W=W, k=k, pad=pad,
                               lpad=lpad, Hp=Hp, Wp_al=Wp_al, RT=RT)

    itemsize = jnp.dtype(x.dtype).itemsize
    vmem_est = itemsize * (
        2 * H * W * TC          # input block (double buffered)
        + 2 * H * W * TC        # output block (double buffered)
        + Hp * Wp_al * TC       # padded staging scratch
        + 2 * (k * k + 1) * TC  # weights + bias
    )
    vmem_limit = int(min(max(32 * 1024 * 1024, 2 * vmem_est), 64 * 1024 * 1024))

    out_img = pl.pallas_call(
        kernel,
        out_shape=jax.ShapeDtypeStruct((B, H, W, Cp), x.dtype),
        grid_spec=pltpu.PrefetchScalarGridSpec(
            num_scalar_prefetch=0,
            grid=(B, n_ct),
            in_specs=[
                pl.BlockSpec((None, H, W, TC), lambda b, ci: (b, 0, 0, ci)),
                pl.BlockSpec((k * k, TC), lambda b, ci: (0, ci)),
                pl.BlockSpec((1, TC), lambda b, ci: (0, ci)),
            ],
            out_specs=pl.BlockSpec((None, H, W, TC), lambda b, ci: (b, 0, 0, ci)),
            scratch_shapes=[pltpu.VMEM((Hp, Wp_al, TC), x.dtype)],
        ),
        compiler_params=pltpu.CompilerParams(
            dimension_semantics=("parallel", "parallel"),
            vmem_limit_bytes=vmem_limit,
        ),
    )(x_img, w2d, bias2d)

    out_seq = out_img.reshape(B, H * W, Cp)
    if add_length > 0:
        out_seq = out_seq[:, :N, :]
    if Cp != C:
        out_seq = out_seq[:, :, :C]
    return out_seq


def peg_forward_ref(x, weight_kkc, bias_c, *, k=7):
    """Pure-JAX reference (lax depthwise conv) for validation."""
    B, N, C = x.shape
    H = int(math.ceil(math.sqrt(N)))
    W = H
    add_length = H * W - N
    pad = k // 2
    x_seq = jnp.concatenate([x, x[:, :add_length, :]], axis=1) if add_length > 0 else x
    x_img = x_seq.reshape(B, H, W, C)
    rhs = weight_kkc.reshape(k, k, 1, C)  # HWIO, I = C/groups = 1
    conv = jax.lax.conv_general_dilated(
        x_img, rhs,
        window_strides=(1, 1),
        padding=((pad, pad), (pad, pad)),
        dimension_numbers=("NHWC", "HWIO", "NHWC"),
        feature_group_count=C,
    )
    out = conv + bias_c[None, None, None, :] + x_img
    out = out.reshape(B, H * W, C)
    if add_length > 0:
        out = out[:, :N, :]
    return out


if __name__ == "__main__":
    # Small, deterministic synthetic setup (no checkpoint loading).
    B, N, C, K = 2, 60, 128, 7   # N=60 -> H=W=8, add_length=4
    key = jax.random.PRNGKey(0)
    kx, kw, kb = jax.random.split(key, 3)

    x = jax.random.normal(kx, (B, N, C), dtype=jnp.float32)
    # PyTorch depthwise Conv2d weight is (C, 1, k, k); carried here directly in
    # (k, k, C) layout for the NHWC kernel (permute(2, 3, 0, 1) + squeeze).
    weight_kkc = jax.random.normal(kw, (K, K, C), dtype=jnp.float32) * 0.05
    bias_c = jax.random.normal(kb, (C,), dtype=jnp.float32) * 0.05

    out = jax.block_until_ready(peg_forward(x, weight_kkc, bias_c, k=K))
    ref = peg_forward_ref(x, weight_kkc, bias_c, k=K)

    assert out.shape == (B, N, C)
    assert jnp.allclose(out, ref, atol=1e-4, rtol=1e-4), "mismatch vs reference"

    print("KERNEL_OK")
</pallas_src>

<mosaic_0001>
module attributes {stable_mosaic.version = 11 : i64} {
  func.func @_peg_dwconv_kernel(%arg0: i32, %arg1: i32, %arg2: memref<1x8x8x128xf32, #tpu.memory_space<vmem>>, %arg3: memref<49x128xf32, #tpu.memory_space<vmem>>, %arg4: memref<1x128xf32, #tpu.memory_space<vmem>>, %arg5: memref<1x8x8x128xf32, #tpu.memory_space<vmem>>, %arg6: memref<14x24x128xf32, #tpu.memory_space<vmem>>) attributes {dimension_semantics = [#tpu.dimension_semantics<parallel>, #tpu.dimension_semantics<parallel>], iteration_bounds = array<i64: 2, 1>, scalar_prefetch = 0 : i64, scratch_operands = 1 : i64, tpu.core_type = #tpu.core_type<tc>, window_params = [{transform_indices = @transform_0, window_bounds = array<i64: 1, 8, 8, 128>}, {transform_indices = @transform_1, window_bounds = array<i64: 49, 128>}, {transform_indices = @transform_2, window_bounds = array<i64: 1, 128>}, {transform_indices = @transform_3, window_bounds = array<i64: 1, 8, 8, 128>}]} {
    %cst = arith.constant 0.000000e+00 : f32
    %0 = vector.broadcast %cst : f32 to vector<3x24x128xf32>
    %c0 = arith.constant 0 : index
    %c0_0 = arith.constant 0 : index
    %c0_1 = arith.constant 0 : index
    %1 = vector.load %arg6[%c0, %c0_0, %c0_1] : memref<14x24x128xf32, #tpu.memory_space<vmem>>, vector<3x24x128xf32>
    tpu.vector_store %arg6[%c0, %c0_0, %c0_1], %0 {strides = array<i32>} : memref<14x24x128xf32, #tpu.memory_space<vmem>>, vector<3x24x128xf32>,
    %cst_2 = arith.constant 0.000000e+00 : f32
    %2 = vector.broadcast %cst_2 : f32 to vector<3x24x128xf32>
    %c11 = arith.constant 11 : index
    %c0_3 = arith.constant 0 : index
    %c0_4 = arith.constant 0 : index
    %3 = vector.load %arg6[%c11, %c0_3, %c0_4] : memref<14x24x128xf32, #tpu.memory_space<vmem>>, vector<3x24x128xf32>
    tpu.vector_store %arg6[%c11, %c0_3, %c0_4], %2 {strides = array<i32>} : memref<14x24x128xf32, #tpu.memory_space<vmem>>, vector<3x24x128xf32>,
    %cst_5 = arith.constant 0.000000e+00 : f32
    %4 = vector.broadcast %cst_5 : f32 to vector<8x8x128xf32>
    %c3 = arith.constant 3 : index
    %c0_6 = arith.constant 0 : index
    %c0_7 = arith.constant 0 : index
    %5 = vector.load %arg6[%c3, %c0_6, %c0_7] : memref<14x24x128xf32, #tpu.memory_space<vmem>>, vector<8x8x128xf32>
    tpu.vector_store %arg6[%c3, %c0_6, %c0_7], %4 {strides = array<i32>} : memref<14x24x128xf32, #tpu.memory_space<vmem>>, vector<8x8x128xf32>,
    %cst_8 = arith.constant 0.000000e+00 : f32
    %6 = vector.broadcast %cst_8 : f32 to vector<8x8x128xf32>
    %c3_9 = arith.constant 3 : index
    %c16 = arith.constant 16 : index
    %c0_10 = arith.constant 0 : index
    %7 = vector.load %arg6[%c3_9, %c16, %c0_10] : memref<14x24x128xf32, #tpu.memory_space<vmem>>, vector<8x8x128xf32>
    tpu.vector_store %arg6[%c3_9, %c16, %c0_10], %6 {strides = array<i32>} : memref<14x24x128xf32, #tpu.memory_space<vmem>>, vector<8x8x128xf32>,
    %c0_11 = arith.constant 0 : index
    %c0_12 = arith.constant 0 : index
    %c0_13 = arith.constant 0 : index
    %c0_14 = arith.constant 0 : index
    %8 = vector.load %arg2[%c0_11, %c0_12, %c0_13, %c0_14] : memref<1x8x8x128xf32, #tpu.memory_space<vmem>>, vector<1x8x8x128xf32>
    %9 = vector.shape_cast %8 : vector<1x8x8x128xf32> to vector<8x8x128xf32>
    %c3_15 = arith.constant 3 : index
    %c8 = arith.constant 8 : index
    %c0_16 = arith.constant 0 : index
    %10 = vector.load %arg6[%c3_15, %c8, %c0_16] : memref<14x24x128xf32, #tpu.memory_space<vmem>>, vector<8x8x128xf32>
    tpu.vector_store %arg6[%c3_15, %c8, %c0_16], %9 {strides = array<i32>} : memref<14x24x128xf32, #tpu.memory_space<vmem>>, vector<8x8x128xf32>,
    %c0_17 = arith.constant 0 : index
    %c0_18 = arith.constant 0 : index
    %11 = vector.load %arg3[%c0_17, %c0_18] : memref<49x128xf32, #tpu.memory_space<vmem>>, vector<49x128xf32>
    %c0_19 = arith.constant 0 : index
    %c0_20 = arith.constant 0 : index
    %12 = vector.load %arg4[%c0_19, %c0_20] : memref<1x128xf32, #tpu.memory_space<vmem>>, vector<1x128xf32>
    %13 = vector.shape_cast %12 : vector<1x128xf32> to vector<1x1x128xf32>
    %14 = vector.shape_cast %13 : vector<1x1x128xf32> to vector<1x1x128xf32>
    %15 = vector.broadcast %14 : vector<1x1x128xf32> to vector<8x8x128xf32>
    %c0_21 = arith.constant 0 : index
    %c5 = arith.constant 5 : index
    %c0_22 = arith.constant 0 : index
    %16 = vector.load %arg6[%c0_21, %c5, %c0_22] : memref<14x24x128xf32, #tpu.memory_space<vmem>>, vector<8x8x128xf32>
    %17 = vector.extract_strided_slice %11 {offsets = [0, 0], sizes = [1, 128], strides = [1, 1]} : vector<49x128xf32> to vector<1x128xf32>
    %18 = vector.shape_cast %17 : vector<1x128xf32> to vector<128xf32>
    %19 = vector.shape_cast %18 : vector<128xf32> to vector<1x1x128xf32>
    %20 = vector.broadcast %19 : vector<1x1x128xf32> to vector<8x8x128xf32>
    %21 = arith.mulf %16, %20 : vector<8x8x128xf32>
    %22 = arith.addf %15, %21 : vector<8x8x128xf32>
    %c0_23 = arith.constant 0 : index
    %c6 = arith.constant 6 : index
    %c0_24 = arith.constant 0 : index
    %23 = vector.load %arg6[%c0_23, %c6, %c0_24] : memref<14x24x128xf32, #tpu.memory_space<vmem>>, vector<8x8x128xf32>
    %24 = vector.extract_strided_slice %11 {offsets = [1, 0], sizes = [1, 128], strides = [1, 1]} : vector<49x128xf32> to vector<1x128xf32>
    %25 = vector.shape_cast %24 : vector<1x128xf32> to vector<128xf32>
    %26 = vector.shape_cast %25 : vector<128xf32> to vector<1x1x128xf32>
    %27 = vector.broadcast %26 : vector<1x1x128xf32> to vector<8x8x128xf32>
    %28 = arith.mulf %23, %27 : vector<8x8x128xf32>
    %29 = arith.addf %22, %28 : vector<8x8x128xf32>
    %c0_25 = arith.constant 0 : index
    %c7 = arith.constant 7 : index
    %c0_26 = arith.constant 0 : index
    %30 = vector.load %arg6[%c0_25, %c7, %c0_26] : memref<14x24x128xf32, #tpu.memory_space<vmem>>, vector<8x8x128xf32>
    %31 = vector.extract_strided_slice %11 {offsets = [2, 0], sizes = [1, 128], strides = [1, 1]} : vector<49x128xf32> to vector<1x128xf32>
    %32 = vector.shape_cast %31 : vector<1x128xf32> to vector<128xf32>
    %33 = vector.shape_cast %32 : vector<128xf32> to vector<1x1x128xf32>
    %34 = vector.broadcast %33 : vector<1x1x128xf32> to vector<8x8x128xf32>
    %35 = arith.mulf %30, %34 : vector<8x8x128xf32>
    %36 = arith.addf %29, %35 : vector<8x8x128xf32>
    %c0_27 = arith.constant 0 : index
    %c8_28 = arith.constant 8 : index
    %c0_29 = arith.constant 0 : index
    %37 = vector.load %arg6[%c0_27, %c8_28, %c0_29] : memref<14x24x128xf32, #tpu.memory_space<vmem>>, vector<8x8x128xf32>
    %38 = vector.extract_strided_slice %11 {offsets = [3, 0], sizes = [1, 128], strides = [1, 1]} : vector<49x128xf32> to vector<1x128xf32>
    %39 = vector.shape_cast %38 : vector<1x128xf32> to vector<128xf32>
    %40 = vector.shape_cast %39 : vector<128xf32> to vector<1x1x128xf32>
    %41 = vector.broadcast %40 : vector<1x1x128xf32> to vector<8x8x128xf32>
    %42 = arith.mulf %37, %41 : vector<8x8x128xf32>
    %43 = arith.addf %36, %42 : vector<8x8x128xf32>
    %c0_30 = arith.constant 0 : index
    %c9 = arith.constant 9 : index
    %c0_31 = arith.constant 0 : index
    %44 = vector.load %arg6[%c0_30, %c9, %c0_31] : memref<14x24x128xf32, #tpu.memory_space<vmem>>, vector<8x8x128xf32>
    %45 = vector.extract_strided_slice %11 {offsets = [4, 0], sizes = [1, 128], strides = [1, 1]} : vector<49x128xf32> to vector<1x128xf32>
    %46 = vector.shape_cast %45 : vector<1x128xf32> to vector<128xf32>
    %47 = vector.shape_cast %46 : vector<128xf32> to vector<1x1x128xf32>
    %48 = vector.broadcast %47 : vector<1x1x128xf32> to vector<8x8x128xf32>
    %49 = arith.mulf %44, %48 : vector<8x8x128xf32>
    %50 = arith.addf %43, %49 : vector<8x8x128xf32>
    %c0_32 = arith.constant 0 : index
    %c10 = arith.constant 10 : index
    %c0_33 = arith.constant 0 : index
    %51 = vector.load %arg6[%c0_32, %c10, %c0_33] : memref<14x24x128xf32, #tpu.memory_space<vmem>>, vector<8x8x128xf32>
    %52 = vector.extract_strided_slice %11 {offsets = [5, 0], sizes = [1, 128], strides = [1, 1]} : vector<49x128xf32> to vector<1x128xf32>
    %53 = vector.shape_cast %52 : vector<1x128xf32> to vector<128xf32>
    %54 = vector.shape_cast %53 : vector<128xf32> to vector<1x1x128xf32>
    %55 = vector.broadcast %54 : vector<1x1x128xf32> to vector<8x8x128xf32>
    %56 = arith.mulf %51, %55 : vector<8x8x128xf32>
    %57 = arith.addf %50, %56 : vector<8x8x128xf32>
    %c0_34 = arith.constant 0 : index
    %c11_35 = arith.constant 11 : index
    %c0_36 = arith.constant 0 : index
    %58 = vector.load %arg6[%c0_34, %c11_35, %c0_36] : memref<14x24x128xf32, #tpu.memory_space<vmem>>, vector<8x8x128xf32>
    %59 = vector.extract_strided_slice %11 {offsets = [6, 0], sizes = [1, 128], strides = [1, 1]} : vector<49x128xf32> to vector<1x128xf32>
    %60 = vector.shape_cast %59 : vector<1x128xf32> to vector<128xf32>
    %61 = vector.shape_cast %60 : vector<128xf32> to vector<1x1x128xf32>
    %62 = vector.broadcast %61 : vector<1x1x128xf32> to vector<8x8x128xf32>
    %63 = arith.mulf %58, %62 : vector<8x8x128xf32>
    %64 = arith.addf %57, %63 : vector<8x8x128xf32>
    %c1 = arith.constant 1 : index
    %c5_37 = arith.constant 5 : index
    %c0_38 = arith.constant 0 : index
    %65 = vector.load %arg6[%c1, %c5_37, %c0_38] : memref<14x24x128xf32, #tpu.memory_space<vmem>>, vector<8x8x128xf32>
    %66 = vector.extract_strided_slice %11 {offsets = [7, 0], sizes = [1, 128], strides = [1, 1]} : vector<49x128xf32> to vector<1x128xf32>
    %67 = vector.shape_cast %66 : vector<1x128xf32> to vector<128xf32>
    %68 = vector.shape_cast %67 : vector<128xf32> to vector<1x1x128xf32>
    %69 = vector.broadcast %68 : vector<1x1x128xf32> to vector<8x8x128xf32>
    %70 = arith.mulf %65, %69 : vector<8x8x128xf32>
    %71 = arith.addf %64, %70 : vector<8x8x128xf32>
    %c1_39 = arith.constant 1 : index
    %c6_40 = arith.constant 6 : index
    %c0_41 = arith.constant 0 : index
    %72 = vector.load %arg6[%c1_39, %c6_40, %c0_41] : memref<14x24x128xf32, #tpu.memory_space<vmem>>, vector<8x8x128xf32>
    %73 = vector.extract_strided_slice %11 {offsets = [8, 0], sizes = [1, 128], strides = [1, 1]} : vector<49x128xf32> to vector<1x128xf32>
    %74 = vector.shape_cast %73 : vector<1x128xf32> to vector<128xf32>
    %75 = vector.shape_cast %74 : vector<128xf32> to vector<1x1x128xf32>
    %76 = vector.broadcast %75 : vector<1x1x128xf32> to vector<8x8x128xf32>
    %77 = arith.mulf %72, %76 : vector<8x8x128xf32>
    %78 = arith.addf %71, %77 : vector<8x8x128xf32>
    %c1_42 = arith.constant 1 : index
    %c7_43 = arith.constant 7 : index
    %c0_44 = arith.constant 0 : index
    %79 = vector.load %arg6[%c1_42, %c7_43, %c0_44] : memref<14x24x128xf32, #tpu.memory_space<vmem>>, vector<8x8x128xf32>
    %80 = vector.extract_strided_slice %11 {offsets = [9, 0], sizes = [1, 128], strides = [1, 1]} : vector<49x128xf32> to vector<1x128xf32>
    %81 = vector.shape_cast %80 : vector<1x128xf32> to vector<128xf32>
    %82 = vector.shape_cast %81 : vector<128xf32> to vector<1x1x128xf32>
    %83 = vector.broadcast %82 : vector<1x1x128xf32> to vector<8x8x128xf32>
    %84 = arith.mulf %79, %83 : vector<8x8x128xf32>
    %85 = arith.addf %78, %84 : vector<8x8x128xf32>
    %c1_45 = arith.constant 1 : index
    %c8_46 = arith.constant 8 : index
    %c0_47 = arith.constant 0 : index
    %86 = vector.load %arg6[%c1_45, %c8_46, %c0_47] : memref<14x24x128xf32, #tpu.memory_space<vmem>>, vector<8x8x128xf32>
    %87 = vector.extract_strided_slice %11 {offsets = [10, 0], sizes = [1, 128], strides = [1, 1]} : vector<49x128xf32> to vector<1x128xf32>
    %88 = vector.shape_cast %87 : vector<1x128xf32> to vector<128xf32>
    %89 = vector.shape_cast %88 : vector<128xf32> to vector<1x1x128xf32>
    %90 = vector.broadcast %89 : vector<1x1x128xf32> to vector<8x8x128xf32>
    %91 = arith.mulf %86, %90 : vector<8x8x128xf32>
    %92 = arith.addf %85, %91 : vector<8x8x128xf32>
    %c1_48 = arith.constant 1 : index
    %c9_49 = arith.constant 9 : index
    %c0_50 = arith.constant 0 : index
    %93 = vector.load %arg6[%c1_48, %c9_49, %c0_50] : memref<14x24x128xf32, #tpu.memory_space<vmem>>, vector<8x8x128xf32>
    %94 = vector.extract_strided_slice %11 {offsets = [11, 0], sizes = [1, 128], strides = [1, 1]} : vector<49x128xf32> to vector<1x128xf32>
    %95 = vector.shape_cast %94 : vector<1x128xf32> to vector<128xf32>
    %96 = vector.shape_cast %95 : vector<128xf32> to vector<1x1x128xf32>
    %97 = vector.broadcast %96 : vector<1x1x128xf32> to vector<8x8x128xf32>
    %98 = arith.mulf %93, %97 : vector<8x8x128xf32>
    %99 = arith.addf %92, %98 : vector<8x8x128xf32>
    %c1_51 = arith.constant 1 : index
    %c10_52 = arith.constant 10 : index
    %c0_53 = arith.constant 0 : index
    %100 = vector.load %arg6[%c1_51, %c10_52, %c0_53] : memref<14x24x128xf32, #tpu.memory_space<vmem>>, vector<8x8x128xf32>
    %101 = vector.extract_strided_slice %11 {offsets = [12, 0], sizes = [1, 128], strides = [1, 1]} : vector<49x128xf32> to vector<1x128xf32>
    %102 = vector.shape_cast %101 : vector<1x128xf32> to vector<128xf32>
    %103 = vector.shape_cast %102 : vector<128xf32> to vector<1x1x128xf32>
    %104 = vector.broadcast %103 : vector<1x1x128xf32> to vector<8x8x128xf32>
    %105 = arith.mulf %100, %104 : vector<8x8x128xf32>
    %106 = arith.addf %99, %105 : vector<8x8x128xf32>
    %c1_54 = arith.constant 1 : index
    %c11_55 = arith.constant 11 : index
    %c0_56 = arith.constant 0 : index
    %107 = vector.load %arg6[%c1_54, %c11_55, %c0_56] : memref<14x24x128xf32, #tpu.memory_space<vmem>>, vector<8x8x128xf32>
    %108 = vector.extract_strided_slice %11 {offsets = [13, 0], sizes = [1, 128], strides = [1, 1]} : vector<49x128xf32> to vector<1x128xf32>
    %109 = vector.shape_cast %108 : vector<1x128xf32> to vector<128xf32>
    %110 = vector.shape_cast %109 : vector<128xf32> to vector<1x1x128xf32>
    %111 = vector.broadcast %110 : vector<1x1x128xf32> to vector<8x8x128xf32>
    %112 = arith.mulf %107, %111 : vector<8x8x128xf32>
    %113 = arith.addf %106, %112 : vector<8x8x128xf32>
    %c2 = arith.constant 2 : index
    %c5_57 = arith.constant 5 : index
    %c0_58 = arith.constant 0 : index
    %114 = vector.load %arg6[%c2, %c5_57, %c0_58] : memref<14x24x128xf32, #tpu.memory_space<vmem>>, vector<8x8x128xf32>
    %115 = vector.extract_strided_slice %11 {offsets = [14, 0], sizes = [1, 128], strides = [1, 1]} : vector<49x128xf32> to vector<1x128xf32>
    %116 = vector.shape_cast %115 : vector<1x128xf32> to vector<128xf32>
    %117 = vector.shape_cast %116 : vector<128xf32> to vector<1x1x128xf32>
    %118 = vector.broadcast %117 : vector<1x1x128xf32> to vector<8x8x128xf32>
    %119 = arith.mulf %114, %118 : vector<8x8x128xf32>
    %120 = arith.addf %113, %119 : vector<8x8x128xf32>
    %c2_59 = arith.constant 2 : index
    %c6_60 = arith.constant 6 : index
    %c0_61 = arith.constant 0 : index
    %121 = vector.load %arg6[%c2_59, %c6_60, %c0_61] : memref<14x24x128xf32, #tpu.memory_space<vmem>>, vector<8x8x128xf32>
    %122 = vector.extract_strided_slice %11 {offsets = [15, 0], sizes = [1, 128], strides = [1, 1]} : vector<49x128xf32> to vector<1x128xf32>
    %123 = vector.shape_cast %122 : vector<1x128xf32> to vector<128xf32>
    %124 = vector.shape_cast %123 : vector<128xf32> to vector<1x1x128xf32>
    %125 = vector.broadcast %124 : vector<1x1x128xf32> to vector<8x8x128xf32>
    %126 = arith.mulf %121, %125 : vector<8x8x128xf32>
    %127 = arith.addf %120, %126 : vector<8x8x128xf32>
    %c2_62 = arith.constant 2 : index
    %c7_63 = arith.constant 7 : index
    %c0_64 = arith.constant 0 : index
    %128 = vector.load %arg6[%c2_62, %c7_63, %c0_64] : memref<14x24x128xf32, #tpu.memory_space<vmem>>, vector<8x8x128xf32>
    %129 = vector.extract_strided_slice %11 {offsets = [16, 0], sizes = [1, 128], strides = [1, 1]} : vector<49x128xf32> to vector<1x128xf32>
    %130 = vector.shape_cast %129 : vector<1x128xf32> to vector<128xf32>
    %131 = vector.shape_cast %130 : vector<128xf32> to vector<1x1x128xf32>
    %132 = vector.broadcast %131 : vector<1x1x128xf32> to vector<8x8x128xf32>
    %133 = arith.mulf %128, %132 : vector<8x8x128xf32>
    %134 = arith.addf %127, %133 : vector<8x8x128xf32>
    %c2_65 = arith.constant 2 : index
    %c8_66 = arith.constant 8 : index
    %c0_67 = arith.constant 0 : index
    %135 = vector.load %arg6[%c2_65, %c8_66, %c0_67] : memref<14x24x128xf32, #tpu.memory_space<vmem>>, vector<8x8x128xf32>
    %136 = vector.extract_strided_slice %11 {offsets = [17, 0], sizes = [1, 128], strides = [1, 1]} : vector<49x128xf32> to vector<1x128xf32>
    %137 = vector.shape_cast %136 : vector<1x128xf32> to vector<128xf32>
    %138 = vector.shape_cast %137 : vector<128xf32> to vector<1x1x128xf32>
    %139 = vector.broadcast %138 : vector<1x1x128xf32> to vector<8x8x128xf32>
    %140 = arith.mulf %135, %139 : vector<8x8x128xf32>
    %141 = arith.addf %134, %140 : vector<8x8x128xf32>
    %c2_68 = arith.constant 2 : index
    %c9_69 = arith.constant 9 : index
    %c0_70 = arith.constant 0 : index
    %142 = vector.load %arg6[%c2_68, %c9_69, %c0_70] : memref<14x24x128xf32, #tpu.memory_space<vmem>>, vector<8x8x128xf32>
    %143 = vector.extract_strided_slice %11 {offsets = [18, 0], sizes = [1, 128], strides = [1, 1]} : vector<49x128xf32> to vector<1x128xf32>
    %144 = vector.shape_cast %143 : vector<1x128xf32> to vector<128xf32>
    %145 = vector.shape_cast %144 : vector<128xf32> to vector<1x1x128xf32>
    %146 = vector.broadcast %145 : vector<1x1x128xf32> to vector<8x8x128xf32>
    %147 = arith.mulf %142, %146 : vector<8x8x128xf32>
    %148 = arith.addf %141, %147 : vector<8x8x128xf32>
    %c2_71 = arith.constant 2 : index
    %c10_72 = arith.constant 10 : index
    %c0_73 = arith.constant 0 : index
    %149 = vector.load %arg6[%c2_71, %c10_72, %c0_73] : memref<14x24x128xf32, #tpu.memory_space<vmem>>, vector<8x8x128xf32>
    %150 = vector.extract_strided_slice %11 {offsets = [19, 0], sizes = [1, 128], strides = [1, 1]} : vector<49x128xf32> to vector<1x128xf32>
    %151 = vector.shape_cast %150 : vector<1x128xf32> to vector<128xf32>
    %152 = vector.shape_cast %151 : vector<128xf32> to vector<1x1x128xf32>
    %153 = vector.broadcast %152 : vector<1x1x128xf32> to vector<8x8x128xf32>
    %154 = arith.mulf %149, %153 : vector<8x8x128xf32>
    %155 = arith.addf %148, %154 : vector<8x8x128xf32>
    %c2_74 = arith.constant 2 : index
    %c11_75 = arith.constant 11 : index
    %c0_76 = arith.constant 0 : index
    %156 = vector.load %arg6[%c2_74, %c11_75, %c0_76] : memref<14x24x128xf32, #tpu.memory_space<vmem>>, vector<8x8x128xf32>
    %157 = vector.extract_strided_slice %11 {offsets = [20, 0], sizes = [1, 128], strides = [1, 1]} : vector<49x128xf32> to vector<1x128xf32>
    %158 = vector.shape_cast %157 : vector<1x128xf32> to vector<128xf32>
    %159 = vector.shape_cast %158 : vector<128xf32> to vector<1x1x128xf32>
    %160 = vector.broadcast %159 : vector<1x1x128xf32> to vector<8x8x128xf32>
    %161 = arith.mulf %156, %160 : vector<8x8x128xf32>
    %162 = arith.addf %155, %161 : vector<8x8x128xf32>
    %c3_77 = arith.constant 3 : index
    %c5_78 = arith.constant 5 : index
    %c0_79 = arith.constant 0 : index
    %163 = vector.load %arg6[%c3_77, %c5_78, %c0_79] : memref<14x24x128xf32, #tpu.memory_space<vmem>>, vector<8x8x128xf32>
    %164 = vector.extract_strided_slice %11 {offsets = [21, 0], sizes = [1, 128], strides = [1, 1]} : vector<49x128xf32> to vector<1x128xf32>
    %165 = vector.shape_cast %164 : vector<1x128xf32> to vector<128xf32>
    %166 = vector.shape_cast %165 : vector<128xf32> to vector<1x1x128xf32>
    %167 = vector.broadcast %166 : vector<1x1x128xf32> to vector<8x8x128xf32>
    %168 = arith.mulf %163, %167 : vector<8x8x128xf32>
    %169 = arith.addf %162, %168 : vector<8x8x128xf32>
    %c3_80 = arith.constant 3 : index
    %c6_81 = arith.constant 6 : index
    %c0_82 = arith.constant 0 : index
    %170 = vector.load %arg6[%c3_80, %c6_81, %c0_82] : memref<14x24x128xf32, #tpu.memory_space<vmem>>, vector<8x8x128xf32>
    %171 = vector.extract_strided_slice %11 {offsets = [22, 0], sizes = [1, 128], strides = [1, 1]} : vector<49x128xf32> to vector<1x128xf32>
    %172 = vector.shape_cast %171 : vector<1x128xf32> to vector<128xf32>
    %173 = vector.shape_cast %172 : vector<128xf32> to vector<1x1x128xf32>
    %174 = vector.broadcast %173 : vector<1x1x128xf32> to vector<8x8x128xf32>
    %175 = arith.mulf %170, %174 : vector<8x8x128xf32>
    %176 = arith.addf %169, %175 : vector<8x8x128xf32>
    %c3_83 = arith.constant 3 : index
    %c7_84 = arith.constant 7 : index
    %c0_85 = arith.constant 0 : index
    %177 = vector.load %arg6[%c3_83, %c7_84, %c0_85] : memref<14x24x128xf32, #tpu.memory_space<vmem>>, vector<8x8x128xf32>
    %178 = vector.extract_strided_slice %11 {offsets = [23, 0], sizes = [1, 128], strides = [1, 1]} : vector<49x128xf32> to vector<1x128xf32>
    %179 = vector.shape_cast %178 : vector<1x128xf32> to vector<128xf32>
    %180 = vector.shape_cast %179 : vector<128xf32> to vector<1x1x128xf32>
    %181 = vector.broadcast %180 : vector<1x1x128xf32> to vector<8x8x128xf32>
    %182 = arith.mulf %177, %181 : vector<8x8x128xf32>
    %183 = arith.addf %176, %182 : vector<8x8x128xf32>
    %c3_86 = arith.constant 3 : index
    %c8_87 = arith.constant 8 : index
    %c0_88 = arith.constant 0 : index
    %184 = vector.load %arg6[%c3_86, %c8_87, %c0_88] : memref<14x24x128xf32, #tpu.memory_space<vmem>>, vector<8x8x128xf32>
    %185 = vector.extract_strided_slice %11 {offsets = [24, 0], sizes = [1, 128], strides = [1, 1]} : vector<49x128xf32> to vector<1x128xf32>
    %186 = vector.shape_cast %185 : vector<1x128xf32> to vector<128xf32>
    %187 = vector.shape_cast %186 : vector<128xf32> to vector<1x1x128xf32>
    %188 = vector.broadcast %187 : vector<1x1x128xf32> to vector<8x8x128xf32>
    %189 = arith.mulf %184, %188 : vector<8x8x128xf32>
    %190 = arith.addf %183, %189 : vector<8x8x128xf32>
    %c3_89 = arith.constant 3 : index
    %c9_90 = arith.constant 9 : index
    %c0_91 = arith.constant 0 : index
    %191 = vector.load %arg6[%c3_89, %c9_90, %c0_91] : memref<14x24x128xf32, #tpu.memory_space<vmem>>, vector<8x8x128xf32>
    %192 = vector.extract_strided_slice %11 {offsets = [25, 0], sizes = [1, 128], strides = [1, 1]} : vector<49x128xf32> to vector<1x128xf32>
    %193 = vector.shape_cast %192 : vector<1x128xf32> to vector<128xf32>
    %194 = vector.shape_cast %193 : vector<128xf32> to vector<1x1x128xf32>
    %195 = vector.broadcast %194 : vector<1x1x128xf32> to vector<8x8x128xf32>
    %196 = arith.mulf %191, %195 : vector<8x8x128xf32>
    %197 = arith.addf %190, %196 : vector<8x8x128xf32>
    %c3_92 = arith.constant 3 : index
    %c10_93 = arith.constant 10 : index
    %c0_94 = arith.constant 0 : index
    %198 = vector.load %arg6[%c3_92, %c10_93, %c0_94] : memref<14x24x128xf32, #tpu.memory_space<vmem>>, vector<8x8x128xf32>
    %199 = vector.extract_strided_slice %11 {offsets = [26, 0], sizes = [1, 128], strides = [1, 1]} : vector<49x128xf32> to vector<1x128xf32>
    %200 = vector.shape_cast %199 : vector<1x128xf32> to vector<128xf32>
    %201 = vector.shape_cast %200 : vector<128xf32> to vector<1x1x128xf32>
    %202 = vector.broadcast %201 : vector<1x1x128xf32> to vector<8x8x128xf32>
    %203 = arith.mulf %198, %202 : vector<8x8x128xf32>
    %204 = arith.addf %197, %203 : vector<8x8x128xf32>
    %c3_95 = arith.constant 3 : index
    %c11_96 = arith.constant 11 : index
    %c0_97 = arith.constant 0 : index
    %205 = vector.load %arg6[%c3_95, %c11_96, %c0_97] : memref<14x24x128xf32, #tpu.memory_space<vmem>>, vector<8x8x128xf32>
    %206 = vector.extract_strided_slice %11 {offsets = [27, 0], sizes = [1, 128], strides = [1, 1]} : vector<49x128xf32> to vector<1x128xf32>
    %207 = vector.shape_cast %206 : vector<1x128xf32> to vector<128xf32>
    %208 = vector.shape_cast %207 : vector<128xf32> to vector<1x1x128xf32>
    %209 = vector.broadcast %208 : vector<1x1x128xf32> to vector<8x8x128xf32>
    %210 = arith.mulf %205, %209 : vector<8x8x128xf32>
    %211 = arith.addf %204, %210 : vector<8x8x128xf32>
    %c4 = arith.constant 4 : index
    %c5_98 = arith.constant 5 : index
    %c0_99 = arith.constant 0 : index
    %212 = vector.load %arg6[%c4, %c5_98, %c0_99] : memref<14x24x128xf32, #tpu.memory_space<vmem>>, vector<8x8x128xf32>
    %213 = vector.extract_strided_slice %11 {offsets = [28, 0], sizes = [1, 128], strides = [1, 1]} : vector<49x128xf32> to vector<1x128xf32>
    %214 = vector.shape_cast %213 : vector<1x128xf32> to vector<128xf32>
    %215 = vector.shape_cast %214 : vector<128xf32> to vector<1x1x128xf32>
    %216 = vector.broadcast %215 : vector<1x1x128xf32> to vector<8x8x128xf32>
    %217 = arith.mulf %212, %216 : vector<8x8x128xf32>
    %218 = arith.addf %211, %217 : vector<8x8x128xf32>
    %c4_100 = arith.constant 4 : index
    %c6_101 = arith.constant 6 : index
    %c0_102 = arith.constant 0 : index
    %219 = vector.load %arg6[%c4_100, %c6_101, %c0_102] : memref<14x24x128xf32, #tpu.memory_space<vmem>>, vector<8x8x128xf32>
    %220 = vector.extract_strided_slice %11 {offsets = [29, 0], sizes = [1, 128], strides = [1, 1]} : vector<49x128xf32> to vector<1x128xf32>
    %221 = vector.shape_cast %220 : vector<1x128xf32> to vector<128xf32>
    %222 = vector.shape_cast %221 : vector<128xf32> to vector<1x1x128xf32>
    %223 = vector.broadcast %222 : vector<1x1x128xf32> to vector<8x8x128xf32>
    %224 = arith.mulf %219, %223 : vector<8x8x128xf32>
    %225 = arith.addf %218, %224 : vector<8x8x128xf32>
    %c4_103 = arith.constant 4 : index
    %c7_104 = arith.constant 7 : index
    %c0_105 = arith.constant 0 : index
    %226 = vector.load %arg6[%c4_103, %c7_104, %c0_105] : memref<14x24x128xf32, #tpu.memory_space<vmem>>, vector<8x8x128xf32>
    %227 = vector.extract_strided_slice %11 {offsets = [30, 0], sizes = [1, 128], strides = [1, 1]} : vector<49x128xf32> to vector<1x128xf32>
    %228 = vector.shape_cast %227 : vector<1x128xf32> to vector<128xf32>
    %229 = vector.shape_cast %228 : vector<128xf32> to vector<1x1x128xf32>
    %230 = vector.broadcast %229 : vector<1x1x128xf32> to vector<8x8x128xf32>
    %231 = arith.mulf %226, %230 : vector<8x8x128xf32>
    %232 = arith.addf %225, %231 : vector<8x8x128xf32>
    %c4_106 = arith.constant 4 : index
    %c8_107 = arith.constant 8 : index
    %c0_108 = arith.constant 0 : index
    %233 = vector.load %arg6[%c4_106, %c8_107, %c0_108] : memref<14x24x128xf32, #tpu.memory_space<vmem>>, vector<8x8x128xf32>
    %234 = vector.extract_strided_slice %11 {offsets = [31, 0], sizes = [1, 128], strides = [1, 1]} : vector<49x128xf32> to vector<1x128xf32>
    %235 = vector.shape_cast %234 : vector<1x128xf32> to vector<128xf32>
    %236 = vector.shape_cast %235 : vector<128xf32> to vector<1x1x128xf32>
    %237 = vector.broadcast %236 : vector<1x1x128xf32> to vector<8x8x128xf32>
    %238 = arith.mulf %233, %237 : vector<8x8x128xf32>
    %239 = arith.addf %232, %238 : vector<8x8x128xf32>
    %c4_109 = arith.constant 4 : index
    %c9_110 = arith.constant 9 : index
    %c0_111 = arith.constant 0 : index
    %240 = vector.load %arg6[%c4_109, %c9_110, %c0_111] : memref<14x24x128xf32, #tpu.memory_space<vmem>>, vector<8x8x128xf32>
    %241 = vector.extract_strided_slice %11 {offsets = [32, 0], sizes = [1, 128], strides = [1, 1]} : vector<49x128xf32> to vector<1x128xf32>
    %242 = vector.shape_cast %241 : vector<1x128xf32> to vector<128xf32>
    %243 = vector.shape_cast %242 : vector<128xf32> to vector<1x1x128xf32>
    %244 = vector.broadcast %243 : vector<1x1x128xf32> to vector<8x8x128xf32>
    %245 = arith.mulf %240, %244 : vector<8x8x128xf32>
    %246 = arith.addf %239, %245 : vector<8x8x128xf32>
    %c4_112 = arith.constant 4 : index
    %c10_113 = arith.constant 10 : index
    %c0_114 = arith.constant 0 : index
    %247 = vector.load %arg6[%c4_112, %c10_113, %c0_114] : memref<14x24x128xf32, #tpu.memory_space<vmem>>, vector<8x8x128xf32>
    %248 = vector.extract_strided_slice %11 {offsets = [33, 0], sizes = [1, 128], strides = [1, 1]} : vector<49x128xf32> to vector<1x128xf32>
    %249 = vector.shape_cast %248 : vector<1x128xf32> to vector<128xf32>
    %250 = vector.shape_cast %249 : vector<128xf32> to vector<1x1x128xf32>
    %251 = vector.broadcast %250 : vector<1x1x128xf32> to vector<8x8x128xf32>
    %252 = arith.mulf %247, %251 : vector<8x8x128xf32>
    %253 = arith.addf %246, %252 : vector<8x8x128xf32>
    %c4_115 = arith.constant 4 : index
    %c11_116 = arith.constant 11 : index
    %c0_117 = arith.constant 0 : index
    %254 = vector.load %arg6[%c4_115, %c11_116, %c0_117] : memref<14x24x128xf32, #tpu.memory_space<vmem>>, vector<8x8x128xf32>
    %255 = vector.extract_strided_slice %11 {offsets = [34, 0], sizes = [1, 128], strides = [1, 1]} : vector<49x128xf32> to vector<1x128xf32>
    %256 = vector.shape_cast %255 : vector<1x128xf32> to vector<128xf32>
    %257 = vector.shape_cast %256 : vector<128xf32> to vector<1x1x128xf32>
    %258 = vector.broadcast %257 : vector<1x1x128xf32> to vector<8x8x128xf32>
    %259 = arith.mulf %254, %258 : vector<8x8x128xf32>
    %260 = arith.addf %253, %259 : vector<8x8x128xf32>
    %c5_118 = arith.constant 5 : index
    %c5_119 = arith.constant 5 : index
    %c0_120 = arith.constant 0 : index
    %261 = vector.load %arg6[%c5_118, %c5_119, %c0_120] : memref<14x24x128xf32, #tpu.memory_space<vmem>>, vector<8x8x128xf32>
    %262 = vector.extract_strided_slice %11 {offsets = [35, 0], sizes = [1, 128], strides = [1, 1]} : vector<49x128xf32> to vector<1x128xf32>
    %263 = vector.shape_cast %262 : vector<1x128xf32> to vector<128xf32>
    %264 = vector.shape_cast %263 : vector<128xf32> to vector<1x1x128xf32>
    %265 = vector.broadcast %264 : vector<1x1x128xf32> to vector<8x8x128xf32>
    %266 = arith.mulf %261, %265 : vector<8x8x128xf32>
    %267 = arith.addf %260, %266 : vector<8x8x128xf32>
    %c5_121 = arith.constant 5 : index
    %c6_122 = arith.constant 6 : index
    %c0_123 = arith.constant 0 : index
    %268 = vector.load %arg6[%c5_121, %c6_122, %c0_123] : memref<14x24x128xf32, #tpu.memory_space<vmem>>, vector<8x8x128xf32>
    %269 = vector.extract_strided_slice %11 {offsets = [36, 0], sizes = [1, 128], strides = [1, 1]} : vector<49x128xf32> to vector<1x128xf32>
    %270 = vector.shape_cast %269 : vector<1x128xf32> to vector<128xf32>
    %271 = vector.shape_cast %270 : vector<128xf32> to vector<1x1x128xf32>
    %272 = vector.broadcast %271 : vector<1x1x128xf32> to vector<8x8x128xf32>
    %273 = arith.mulf %268, %272 : vector<8x8x128xf32>
    %274 = arith.addf %267, %273 : vector<8x8x128xf32>
    %c5_124 = arith.constant 5 : index
    %c7_125 = arith.constant 7 : index
    %c0_126 = arith.constant 0 : index
    %275 = vector.load %arg6[%c5_124, %c7_125, %c0_126] : memref<14x24x128xf32, #tpu.memory_space<vmem>>, vector<8x8x128xf32>
    %276 = vector.extract_strided_slice %11 {offsets = [37, 0], sizes = [1, 128], strides = [1, 1]} : vector<49x128xf32> to vector<1x128xf32>
    %277 = vector.shape_cast %276 : vector<1x128xf32> to vector<128xf32>
    %278 = vector.shape_cast %277 : vector<128xf32> to vector<1x1x128xf32>
    %279 = vector.broadcast %278 : vector<1x1x128xf32> to vector<8x8x128xf32>
    %280 = arith.mulf %275, %279 : vector<8x8x128xf32>
    %281 = arith.addf %274, %280 : vector<8x8x128xf32>
    %c5_127 = arith.constant 5 : index
    %c8_128 = arith.constant 8 : index
    %c0_129 = arith.constant 0 : index
    %282 = vector.load %arg6[%c5_127, %c8_128, %c0_129] : memref<14x24x128xf32, #tpu.memory_space<vmem>>, vector<8x8x128xf32>
    %283 = vector.extract_strided_slice %11 {offsets = [38, 0], sizes = [1, 128], strides = [1, 1]} : vector<49x128xf32> to vector<1x128xf32>
    %284 = vector.shape_cast %283 : vector<1x128xf32> to vector<128xf32>
    %285 = vector.shape_cast %284 : vector<128xf32> to vector<1x1x128xf32>
    %286 = vector.broadcast %285 : vector<1x1x128xf32> to vector<8x8x128xf32>
    %287 = arith.mulf %282, %286 : vector<8x8x128xf32>
    %288 = arith.addf %281, %287 : vector<8x8x128xf32>
    %c5_130 = arith.constant 5 : index
    %c9_131 = arith.constant 9 : index
    %c0_132 = arith.constant 0 : index
    %289 = vector.load %arg6[%c5_130, %c9_131, %c0_132] : memref<14x24x128xf32, #tpu.memory_space<vmem>>, vector<8x8x128xf32>
    %290 = vector.extract_strided_slice %11 {offsets = [39, 0], sizes = [1, 128], strides = [1, 1]} : vector<49x128xf32> to vector<1x128xf32>
    %291 = vector.shape_cast %290 : vector<1x128xf32> to vector<128xf32>
    %292 = vector.shape_cast %291 : vector<128xf32> to vector<1x1x128xf32>
    %293 = vector.broadcast %292 : vector<1x1x128xf32> to vector<8x8x128xf32>
    %294 = arith.mulf %289, %293 : vector<8x8x128xf32>
    %295 = arith.addf %288, %294 : vector<8x8x128xf32>
    %c5_133 = arith.constant 5 : index
    %c10_134 = arith.constant 10 : index
    %c0_135 = arith.constant 0 : index
    %296 = vector.load %arg6[%c5_133, %c10_134, %c0_135] : memref<14x24x128xf32, #tpu.memory_space<vmem>>, vector<8x8x128xf32>
    %297 = vector.extract_strided_slice %11 {offsets = [40, 0], sizes = [1, 128], strides = [1, 1]} : vector<49x128xf32> to vector<1x128xf32>
    %298 = vector.shape_cast %297 : vector<1x128xf32> to vector<128xf32>
    %299 = vector.shape_cast %298 : vector<128xf32> to vector<1x1x128xf32>
    %300 = vector.broadcast %299 : vector<1x1x128xf32> to vector<8x8x128xf32>
    %301 = arith.mulf %296, %300 : vector<8x8x128xf32>
    %302 = arith.addf %295, %301 : vector<8x8x128xf32>
    %c5_136 = arith.constant 5 : index
    %c11_137 = arith.constant 11 : index
    %c0_138 = arith.constant 0 : index
    %303 = vector.load %arg6[%c5_136, %c11_137, %c0_138] : memref<14x24x128xf32, #tpu.memory_space<vmem>>, vector<8x8x128xf32>
    %304 = vector.extract_strided_slice %11 {offsets = [41, 0], sizes = [1, 128], strides = [1, 1]} : vector<49x128xf32> to vector<1x128xf32>
    %305 = vector.shape_cast %304 : vector<1x128xf32> to vector<128xf32>
    %306 = vector.shape_cast %305 : vector<128xf32> to vector<1x1x128xf32>
    %307 = vector.broadcast %306 : vector<1x1x128xf32> to vector<8x8x128xf32>
    %308 = arith.mulf %303, %307 : vector<8x8x128xf32>
    %309 = arith.addf %302, %308 : vector<8x8x128xf32>
    %c6_139 = arith.constant 6 : index
    %c5_140 = arith.constant 5 : index
    %c0_141 = arith.constant 0 : index
    %310 = vector.load %arg6[%c6_139, %c5_140, %c0_141] : memref<14x24x128xf32, #tpu.memory_space<vmem>>, vector<8x8x128xf32>
    %311 = vector.extract_strided_slice %11 {offsets = [42, 0], sizes = [1, 128], strides = [1, 1]} : vector<49x128xf32> to vector<1x128xf32>
    %312 = vector.shape_cast %311 : vector<1x128xf32> to vector<128xf32>
    %313 = vector.shape_cast %312 : vector<128xf32> to vector<1x1x128xf32>
    %314 = vector.broadcast %313 : vector<1x1x128xf32> to vector<8x8x128xf32>
    %315 = arith.mulf %310, %314 : vector<8x8x128xf32>
    %316 = arith.addf %309, %315 : vector<8x8x128xf32>
    %c6_142 = arith.constant 6 : index
    %c6_143 = arith.constant 6 : index
    %c0_144 = arith.constant 0 : index
    %317 = vector.load %arg6[%c6_142, %c6_143, %c0_144] : memref<14x24x128xf32, #tpu.memory_space<vmem>>, vector<8x8x128xf32>
    %318 = vector.extract_strided_slice %11 {offsets = [43, 0], sizes = [1, 128], strides = [1, 1]} : vector<49x128xf32> to vector<1x128xf32>
    %319 = vector.shape_cast %318 : vector<1x128xf32> to vector<128xf32>
    %320 = vector.shape_cast %319 : vector<128xf32> to vector<1x1x128xf32>
    %321 = vector.broadcast %320 : vector<1x1x128xf32> to vector<8x8x128xf32>
    %322 = arith.mulf %317, %321 : vector<8x8x128xf32>
    %323 = arith.addf %316, %322 : vector<8x8x128xf32>
    %c6_145 = arith.constant 6 : index
    %c7_146 = arith.constant 7 : index
    %c0_147 = arith.constant 0 : index
    %324 = vector.load %arg6[%c6_145, %c7_146, %c0_147] : memref<14x24x128xf32, #tpu.memory_space<vmem>>, vector<8x8x128xf32>
    %325 = vector.extract_strided_slice %11 {offsets = [44, 0], sizes = [1, 128], strides = [1, 1]} : vector<49x128xf32> to vector<1x128xf32>
    %326 = vector.shape_cast %325 : vector<1x128xf32> to vector<128xf32>
    %327 = vector.shape_cast %326 : vector<128xf32> to vector<1x1x128xf32>
    %328 = vector.broadcast %327 : vector<1x1x128xf32> to vector<8x8x128xf32>
    %329 = arith.mulf %324, %328 : vector<8x8x128xf32>
    %330 = arith.addf %323, %329 : vector<8x8x128xf32>
    %c6_148 = arith.constant 6 : index
    %c8_149 = arith.constant 8 : index
    %c0_150 = arith.constant 0 : index
    %331 = vector.load %arg6[%c6_148, %c8_149, %c0_150] : memref<14x24x128xf32, #tpu.memory_space<vmem>>, vector<8x8x128xf32>
    %332 = vector.extract_strided_slice %11 {offsets = [45, 0], sizes = [1, 128], strides = [1, 1]} : vector<49x128xf32> to vector<1x128xf32>
    %333 = vector.shape_cast %332 : vector<1x128xf32> to vector<128xf32>
    %334 = vector.shape_cast %333 : vector<128xf32> to vector<1x1x128xf32>
    %335 = vector.broadcast %334 : vector<1x1x128xf32> to vector<8x8x128xf32>
    %336 = arith.mulf %331, %335 : vector<8x8x128xf32>
    %337 = arith.addf %330, %336 : vector<8x8x128xf32>
    %c6_151 = arith.constant 6 : index
    %c9_152 = arith.constant 9 : index
    %c0_153 = arith.constant 0 : index
    %338 = vector.load %arg6[%c6_151, %c9_152, %c0_153] : memref<14x24x128xf32, #tpu.memory_space<vmem>>, vector<8x8x128xf32>
    %339 = vector.extract_strided_slice %11 {offsets = [46, 0], sizes = [1, 128], strides = [1, 1]} : vector<49x128xf32> to vector<1x128xf32>
    %340 = vector.shape_cast %339 : vector<1x128xf32> to vector<128xf32>
    %341 = vector.shape_cast %340 : vector<128xf32> to vector<1x1x128xf32>
    %342 = vector.broadcast %341 : vector<1x1x128xf32> to vector<8x8x128xf32>
    %343 = arith.mulf %338, %342 : vector<8x8x128xf32>
    %344 = arith.addf %337, %343 : vector<8x8x128xf32>
    %c6_154 = arith.constant 6 : index
    %c10_155 = arith.constant 10 : index
    %c0_156 = arith.constant 0 : index
    %345 = vector.load %arg6[%c6_154, %c10_155, %c0_156] : memref<14x24x128xf32, #tpu.memory_space<vmem>>, vector<8x8x128xf32>
    %346 = vector.extract_strided_slice %11 {offsets = [47, 0], sizes = [1, 128], strides = [1, 1]} : vector<49x128xf32> to vector<1x128xf32>
    %347 = vector.shape_cast %346 : vector<1x128xf32> to vector<128xf32>
    %348 = vector.shape_cast %347 : vector<128xf32> to vector<1x1x128xf32>
    %349 = vector.broadcast %348 : vector<1x1x128xf32> to vector<8x8x128xf32>
    %350 = arith.mulf %345, %349 : vector<8x8x128xf32>
    %351 = arith.addf %344, %350 : vector<8x8x128xf32>
    %c6_157 = arith.constant 6 : index
    %c11_158 = arith.constant 11 : index
    %c0_159 = arith.constant 0 : index
    %352 = vector.load %arg6[%c6_157, %c11_158, %c0_159] : memref<14x24x128xf32, #tpu.memory_space<vmem>>, vector<8x8x128xf32>
    %353 = vector.extract_strided_slice %11 {offsets = [48, 0], sizes = [1, 128], strides = [1, 1]} : vector<49x128xf32> to vector<1x128xf32>
    %354 = vector.shape_cast %353 : vector<1x128xf32> to vector<128xf32>
    %355 = vector.shape_cast %354 : vector<128xf32> to vector<1x1x128xf32>
    %356 = vector.broadcast %355 : vector<1x1x128xf32> to vector<8x8x128xf32>
    %357 = arith.mulf %352, %356 : vector<8x8x128xf32>
    %358 = arith.addf %351, %357 : vector<8x8x128xf32>
    %c0_160 = arith.constant 0 : index
    %c0_161 = arith.constant 0 : index
    %c0_162 = arith.constant 0 : index
    %c0_163 = arith.constant 0 : index
    %359 = vector.load %arg5[%c0_160, %c0_161, %c0_162, %c0_163] : memref<1x8x8x128xf32, #tpu.memory_space<vmem>>, vector<1x8x8x128xf32>
    %360 = vector.shape_cast %359 : vector<1x8x8x128xf32> to vector<8x8x128xf32>
    %361 = vector.shape_cast %358 : vector<8x8x128xf32> to vector<1x8x8x128xf32>
    tpu.vector_store %arg5[%c0_160, %c0_161, %c0_162, %c0_163], %361 {strides = array<i32>} : memref<1x8x8x128xf32, #tpu.memory_space<vmem>>, vector<1x8x8x128xf32>,
    return
  }
  func.func @transform_0(%arg0: i32, %arg1: i32) -> (i32, i32, i32, i32) {
    %c0_i32 = arith.constant 0 : i32
    %c0_i32_0 = arith.constant 0 : i32
    %c0_i32_1 = arith.constant 0 : i32
    return %arg0, %c0_i32, %c0_i32_0, %arg1 : i32, i32, i32, i32
  }
  func.func @transform_1(%arg0: i32, %arg1: i32) -> (i32, i32) {
    %c0_i32 = arith.constant 0 : i32
    %c0_i32_0 = arith.constant 0 : i32
    return %c0_i32, %arg1 : i32, i32
  }
  func.func @transform_2(%arg0: i32, %arg1: i32) -> (i32, i32) {
    %c0_i32 = arith.constant 0 : i32
    %c0_i32_0 = arith.constant 0 : i32
    return %c0_i32, %arg1 : i32, i32
  }
  func.func @transform_3(%arg0: i32, %arg1: i32) -> (i32, i32, i32, i32) {
    %c0_i32 = arith.constant 0 : i32
    %c0_i32_0 = arith.constant 0 : i32
    %c0_i32_1 = arith.constant 0 : i32
    return %arg0, %c0_i32, %c0_i32_0, %arg1 : i32, i32, i32, i32
  }
}

</mosaic_0001>

<llo_original>
// kernel: tpu_custom_call.1
$region0: #{tpu_custom_call.1}
  #allocation0 [shape = 'u32[]', space=smem, size = 0x4, offset = 0x4, fixed_abs, tag = 'smem constant byte address 0x4 - core index']
  #allocation1 [shape = 'u32[72,128]{1,0:T(1,128)}', space=vmem, size = 0x9000, scoped, tag = 'internal scratch']
  #allocation2 [shape = 'f32[14,24,128]{2,1,0:T(8,128)}', space=vmem, size = 0x2a000, scoped, tag = 'scratch operand']
  %s0 = inlined_call_operand.hbm [shape: f32[2,8,8,128], index: 0, kind: input, shape index: {}]
  %s1 = inlined_call_operand.hbm [shape: f32[49,128], index: 1, kind: input, shape index: {}]
  %s2 = inlined_call_operand.vmem [shape: f32[1,128], index: 2, kind: input, shape index: {}]
  %s3 = inlined_call_operand.hbm [shape: f32[2,8,8,128], index: 3, kind: output, shape index: {}]
  %s4 = sld [smem:[#allocation0]]
  $region53: #{tpu_custom_call.1} parent=0
    _
  %s6 = ssub.s32 1, %s4
  %s7 = scalar_select 0, %s6, %s4
  $region1: #{tpu_custom_call.1} parent=0
    #allocation3 [shape = 'u8[65536]{0}', space=vmem, size = 0x10000, scoped, tag = 'input window, operand 0']
    #allocation4 [shape = 's32[2]{0}', space=sflag, size = 0x8, scoped, tag = 'scoped memory for tpu_custom_call.1']
    #allocation5 [shape = 's32[2]{0}', space=sflag, size = 0x8, scoped, tag = 'scoped memory for tpu_custom_call.1']
    #allocation6 [shape = 'u8[28672]{0}', space=vmem, size = 0x7000, scoped, tag = 'input window, operand 1, single buffered']
    #allocation7 [shape = 's32[1]{0}', space=sflag, size = 0x4, scoped, tag = 'scoped memory for tpu_custom_call.1']
    #allocation8 [shape = 'u8[65536]{0}', space=vmem, size = 0x10000, scoped, tag = 'output window, operand 0']
    %8 = vsyncpa [#allocation4], 0
    %s9 = scalar_lea.sflag [#allocation4], 1
    %10 = vsyncpa %s9, 0
    %11 = vsyncpa [#allocation7], 0
    %12 = vsyncpa [#allocation5], 0
    %s13 = scalar_lea.sflag [#allocation5], 1
    %14 = vsyncpa %s13, 0
    loop: start=0, step=1, limit=4
    $region2: #{tpu_custom_call.1} parent=1 // loop_pre_header
      _
    $region3: #{tpu_custom_call.1} parent=1 // loop_header
      %s16 = sphi 0, %s20
      %p17 = scmp.ge.s32.totalorder %s16, 4
      %s23 = sphi 0, %s35
      %s24 = sphi 0, %s31
      %s25 = sphi 0, %s23
      %s26 = sphi 0, %s24
      %s27 = sphi 0, %s25
      %s28 = sphi 0, %s26
      %s40 = sphi 0, %s42
      %s43 = sphi 0, %s40
      %s44 = sphi 0, %s43
      %s60 = sphi 0, %s44
      %s66 = sphi 0, %s68
      %s69 = sphi 0, %s66
      %s70 = sphi 0, %s69
      %s86 = sphi 0, %s70
      %s92 = sphi 0, %s94
      %s95 = sphi 0, %s92
      %s96 = sphi 0, %s95
      %s112 = sphi 0, %s96
      %s120 = sphi 0, %s122
      %s123 = sphi 0, %s120
      %s124 = sphi 0, %s123
      %s140 = sphi 0, %s124
    $region4: #{tpu_custom_call.1} parent=1 // loop_header_branch
      %19 = sbr.rel (%p17) target = $region8
    $region5: #{tpu_custom_call.1} parent=1 // loop_body
      %s21 = ssub.s32 %s16, 1
      %s22 = ssub.s32 %s16, 2
      %s29 = sadd.s32 1, %s24
      %p30 = scmp.ge.s32.totalorder %s29, 1
      %s31 = scalar_select %p30, 0, %s29
      %s32 = sadd.s32 1, %s23
      %s33 = scalar_select %p30, %s32, %s23
      %p34 = scmp.ge.s32.totalorder %s33, 2
      %s35 = scalar_select %p34, 0, %s33
      %s36 = ssub.s32 %s23, %s35
      %s37 = ssub.s32 %s24, %s31
      %s38 = sor.u32 %s36, %s37
      %p39 = scmp.eq.s32.totalorder %s38, 0
      %s41 = sadd.s32 %s40, 1
      %s42 = scalar_select %p39, %s40, %s41
      %p45 = pneg %p39
      %p46 = scmp.eq.s32.totalorder %s16, 1
      %p47 = por %p45, %p46
      %p48 = scmp.ne.s32.totalorder %s40, %s43
      %p49 = scmp.eq.s32.totalorder %s16, 0
      %p50 = por %p48, %p49
      %p51 = scmp.ne.s32.totalorder %s40, %s43
      %p52 = scmp.eq.s32.totalorder %s21, 1
      %p53 = por %p51, %p52
      %p54 = scmp.ne.s32.totalorder %s43, %s44
      %p55 = scmp.eq.s32.totalorder %s21, 0
      %p56 = por %p54, %p55
      %p57 = scmp.ne.s32.totalorder %s43, %s44
      %p58 = scmp.eq.s32.totalorder %s22, 1
      %p59 = por %p57, %p58
      %p61 = scmp.ne.s32.totalorder %s44, %s60
      %p62 = scmp.eq.s32.totalorder %s22, 0
      %p63 = por %p61, %p62
      %s64 = ssub.s32 %s24, %s31
      %p65 = scmp.eq.s32.totalorder %s64, 0
      %s67 = sadd.s32 %s66, 1
      %s68 = scalar_select %p65, %s66, %s67
      %p71 = pneg %p65
      %p72 = scmp.eq.s32.totalorder %s16, 1
      %p73 = por %p71, %p72
      %p74 = scmp.ne.s32.totalorder %s66, %s69
      %p75 = scmp.eq.s32.totalorder %s16, 0
      %p76 = por %p74, %p75
      %p77 = scmp.ne.s32.totalorder %s66, %s69
      %p78 = scmp.eq.s32.totalorder %s21, 1
      %p79 = por %p77, %p78
      %p80 = scmp.ne.s32.totalorder %s69, %s70
      %p81 = scmp.eq.s32.totalorder %s21, 0
      %p82 = por %p80, %p81
      %p83 = scmp.ne.s32.totalorder %s69, %s70
      %p84 = scmp.eq.s32.totalorder %s22, 1
      %p85 = por %p83, %p84
      %p87 = scmp.ne.s32.totalorder %s70, %s86
      %p88 = scmp.eq.s32.totalorder %s22, 0
      %p89 = por %p87, %p88
      %s90 = ssub.s32 %s24, %s31
      %p91 = scmp.eq.s32.totalorder %s90, 0
      %s93 = sadd.s32 %s92, 1
      %s94 = scalar_select %p91, %s92, %s93
      %p97 = pneg %p91
      %p98 = scmp.eq.s32.totalorder %s16, 1
      %p99 = por %p97, %p98
      %p100 = scmp.ne.s32.totalorder %s92, %s95
      %p101 = scmp.eq.s32.totalorder %s16, 0
      %p102 = por %p100, %p101
      %p103 = scmp.ne.s32.totalorder %s92, %s95
      %p104 = scmp.eq.s32.totalorder %s21, 1
      %p105 = por %p103, %p104
      %p106 = scmp.ne.s32.totalorder %s95, %s96
      %p107 = scmp.eq.s32.totalorder %s21, 0
      %p108 = por %p106, %p107
      %p109 = scmp.ne.s32.totalorder %s95, %s96
      %p110 = scmp.eq.s32.totalorder %s22, 1
      %p111 = por %p109, %p110
      %p113 = scmp.ne.s32.totalorder %s96, %s112
      %p114 = scmp.eq.s32.totalorder %s22, 0
      %p115 = por %p113, %p114
      %s116 = ssub.s32 %s23, %s35
      %s117 = ssub.s32 %s24, %s31
      %s118 = sor.u32 %s116, %s117
      %p119 = scmp.eq.s32.totalorder %s118, 0
      %s121 = sadd.s32 %s120, 1
      %s122 = scalar_select %p119, %s120, %s121
      %p125 = pneg %p119
      %p126 = scmp.eq.s32.totalorder %s16, 1
      %p127 = por %p125, %p126
      %p128 = scmp.ne.s32.totalorder %s120, %s123
      %p129 = scmp.eq.s32.totalorder %s16, 0
      %p130 = por %p128, %p129
      %p131 = scmp.ne.s32.totalorder %s120, %s123
      %p132 = scmp.eq.s32.totalorder %s21, 1
      %p133 = por %p131, %p132
      %p134 = scmp.ne.s32.totalorder %s123, %s124
      %p135 = scmp.eq.s32.totalorder %s21, 0
      %p136 = por %p134, %p135
      %p137 = scmp.ne.s32.totalorder %s123, %s124
      %p138 = scmp.eq.s32.totalorder %s22, 1
      %p139 = por %p137, %p138
      %p141 = scmp.ne.s32.totalorder %s124, %s140
      %p142 = scmp.eq.s32.totalorder %s22, 0
      %p143 = por %p141, %p142
      %p144 = scmp.le.s32.totalorder 1, %s16
      %p145 = scmp.lt.s32.totalorder %s16, 3
      %p146 = pnand %p144, %p145
      %p147 = pneg %p146
      // Predicated region
      $region9: #{tpu_custom_call.1} parent=5 // pred_check
        _
      $region10: #{tpu_custom_call.1} parent=5 // pred_check_branch
        %149 = sbr.rel (%p146) target = $region12
      $region11: #{tpu_custom_call.1} parent=5 // pred_region
        %s150 = ssub.s32 %s16, 1
        // Predicated region
        $region13: #{tpu_custom_call.1} parent=11 // pred_check
          %p151 = pneg %p82
        $region14: #{tpu_custom_call.1} parent=11 // pred_check_branch
          %153 = sbr.rel (%p151) target = $region16
        $region15: #{tpu_custom_call.1} parent=11 // pred_region
          %155 = vsyncadd [#allocation7], 0
          %s156 = smul.addr %s26, 8
          %s157 = scalar_lea.hbm %s1, %s156
          %s158 = sshll.u32 %s157, 4
          %s159 = int_to_ptr.hbm [resolvable:$true] %s158
          %s160 = sshll.u32 [#allocation6], 4
          %s161 = int_to_ptr.vmem [resolvable:$true] %s160
          %166 = dma.hbm_to_vmem [thread:$0]  %s159, 896, %s161, [#allocation7], 128, 128, 8
        $region16: #{tpu_custom_call.1} parent=11 // pred_fallthru
          _
        // Predicated region
        $region17: #{tpu_custom_call.1} parent=11 // pred_check
          %p167 = pneg %p108
        $region18: #{tpu_custom_call.1} parent=11 // pred_check_branch
          %169 = sbr.rel (%p167) target = $region20
        $region19: #{tpu_custom_call.1} parent=11 // pred_region
          %p170 = scmp.lt.s32.totalorder %s26, 0
          %s171 = scalar_select %p170, %s26, 0
          %s172 = scalar_lea.vmem %s2, %s171
        $region20: #{tpu_custom_call.1} parent=11 // pred_fallthru
          _
      $region12: #{tpu_custom_call.1} parent=5 // pred_fallthru
        _
      %p173 = scmp.lt.s32.totalorder %s16, 2
      // Predicated region
      $region21: #{tpu_custom_call.1} parent=5 // pred_check
        %p174 = pneg %p173
      $region22: #{tpu_custom_call.1} parent=5 // pred_check_branch
        %176 = sbr.rel (%p174) target = $region24
      $region23: #{tpu_custom_call.1} parent=5 // pred_region
        // Predicated region
        $region25: #{tpu_custom_call.1} parent=23 // pred_check
          %p177 = pneg %p50
        $region26: #{tpu_custom_call.1} parent=23 // pred_check_branch
          %179 = sbr.rel (%p177) target = $region28
        $region27: #{tpu_custom_call.1} parent=23 // pred_region
          %s180 = sand.u32 %s40, 1
          %s181 = scalar_lea.sflag [#allocation4], %s180
          %s182 = sand.u32 %s40, 1
          %s183 = smul.addr %s182, 64
          %s184 = scalar_lea.vmem [#allocation3], %s183
          %186 = vsyncadd %s181, 0
          %s187 = smul.addr %s23, 8
          %s188 = sadd.s32 %s24, %s187
          %s189 = smul.addr %s188, 8
          %s190 = scalar_lea.hbm %s0, %s189
          %s191 = sshll.u32 %s190, 4
          %s192 = int_to_ptr.hbm [resolvable:$true] %s191
          %s193 = sshll.u32 %s184, 4
          %s194 = int_to_ptr.vmem [resolvable:$true] %s193
          %199 = dma.hbm_to_vmem [thread:$0]  %s192, 1024, %s194, %s181, 128, 128, 8
        $region28: #{tpu_custom_call.1} parent=23 // pred_fallthru
          _
      $region24: #{tpu_custom_call.1} parent=5 // pred_fallthru
        _
      %p200 = scmp.le.s32.totalorder 1, %s16
      %p201 = scmp.lt.s32.totalorder %s16, 3
      %p202 = pnand %p200, %p201
      %p203 = pneg %p202
      // Predicated region
      $region29: #{tpu_custom_call.1} parent=5 // pred_check
        _
      $region30: #{tpu_custom_call.1} parent=5 // pred_check_branch
        %205 = sbr.rel (%p202) target = $region32
      $region31: #{tpu_custom_call.1} parent=5 // pred_region
        %s206 = ssub.s32 %s16, 1
        %s207 = sand.u32 %s43, 1
        %s208 = scalar_lea.sflag [#allocation4], %s207
        %s209 = sand.u32 %s43, 1
        %s210 = smul.addr %s209, 64
        %s211 = scalar_lea.vmem [#allocation3], %s210
        // Predicated region
        $region33: #{tpu_custom_call.1} parent=31 // pred_check
          %p212 = pneg %p56
        $region34: #{tpu_custom_call.1} parent=31 // pred_check_branch
          %214 = sbr.rel (%p212) target = $region36
        $region35: #{tpu_custom_call.1} parent=31 // pred_region
          %216 = dma.done %s208, 1024
        $region36: #{tpu_custom_call.1} parent=31 // pred_fallthru
          _
        // Predicated region
        $region37: #{tpu_custom_call.1} parent=31 // pred_check
          %p217 = pneg %p82
        $region38: #{tpu_custom_call.1} parent=31 // pred_check_branch
          %219 = sbr.rel (%p217) target = $region40
        $region39: #{tpu_custom_call.1} parent=31 // pred_region
          %221 = dma.done [#allocation7], 896
        $region40: #{tpu_custom_call.1} parent=31 // pred_fallthru
          _
        %s222 = sand.u32 %s43, 1
        %s223 = scalar_lea.sflag [#allocation4], %s222
        %s224 = sand.u32 %s43, 1
        %s225 = smul.addr %s224, 64
        %s226 = scalar_lea.vmem [#allocation3], %s225
        %p227 = pneg %p56
        %p228 = pneg %p53
        %p229 = pneg %p82
        %p230 = pneg %p79
        %p231 = scmp.lt.s32.totalorder %s26, 0
        %s232 = scalar_select %p231, %s26, 0
        %s233 = scalar_lea.vmem %s2, %s232
        %p234 = pneg %p108
        %p235 = pneg %p105
        %p236 = pneg %p136
        %p237 = pneg %p133
        %s238 = sand.u32 %s123, 1
        %s239 = scalar_lea.sflag [#allocation5], %s238
        %s240 = sand.u32 %s123, 1
        %s241 = smul.addr %s240, 64
        %s242 = scalar_lea.vmem [#allocation8], %s241
        %p243 = scmp.lt.s32.totalorder %s26, 0
        %s244 = scalar_select %p243, %s26, 0
        %s245 = scalar_lea.vmem %s2, %s244
        %246 = vst [vmem:[#allocation2] sm:$0xff] 0.0
        %247 = vst [vmem:[#allocation2 + $0x8] sm:$0xff] 0.0
        %248 = vst [vmem:[#allocation2 + $0x10] sm:$0xff] 0.0
        %249 = vst [vmem:[#allocation2 + $0x18] sm:$0xff] 0.0
        %250 = vst [vmem:[#allocation2 + $0x20] sm:$0xff] 0.0
        %251 = vst [vmem:[#allocation2 + $0x28] sm:$0xff] 0.0
        %252 = vst [vmem:[#allocation2 + $0x30] sm:$0xff] 0.0
        %253 = vst [vmem:[#allocation2 + $0x38] sm:$0xff] 0.0
        %254 = vst [vmem:[#allocation2 + $0x40] sm:$0xff] 0.0
        %s255 = scalar_lea.vmem [#allocation2], 264
        %256 = vst [vmem:[%s255] sm:$0xff] 0.0
        %257 = vst [vmem:[%s255 + $0x8] sm:$0xff] 0.0
        %258 = vst [vmem:[%s255 + $0x10] sm:$0xff] 0.0
        %259 = vst [vmem:[%s255 + $0x18] sm:$0xff] 0.0
        %260 = vst [vmem:[%s255 + $0x20] sm:$0xff] 0.0
        %261 = vst [vmem:[%s255 + $0x28] sm:$0xff] 0.0
        %262 = vst [vmem:[%s255 + $0x30] sm:$0xff] 0.0
        %263 = vst [vmem:[%s255 + $0x38] sm:$0xff] 0.0
        %264 = vst [vmem:[%s255 + $0x40] sm:$0xff] 0.0
        %s265 = scalar_lea.vmem [#allocation2], 72
        %266 = vst [vmem:[%s265] sm:$0xff] 0.0
        %267 = vst [vmem:[%s265 + $0x18] sm:$0xff] 0.0
        %268 = vst [vmem:[%s265 + $0x30] sm:$0xff] 0.0
        %269 = vst [vmem:[%s265 + $0x48] sm:$0xff] 0.0
        %270 = vst [vmem:[%s265 + $0x60] sm:$0xff] 0.0
        %271 = vst [vmem:[%s265 + $0x78] sm:$0xff] 0.0
        %272 = vst [vmem:[%s265 + $0x90] sm:$0xff] 0.0
        %273 = vst [vmem:[%s265 + $0xa8] sm:$0xff] 0.0
        %274 = vst [vmem:[%s265 + $0x10] sm:$0xff] 0.0
        %275 = vst [vmem:[%s265 + $0x28] sm:$0xff] 0.0
        %276 = vst [vmem:[%s265 + $0x40] sm:$0xff] 0.0
        %277 = vst [vmem:[%s265 + $0x58] sm:$0xff] 0.0
        %278 = vst [vmem:[%s265 + $0x70] sm:$0xff] 0.0
        %279 = vst [vmem:[%s265 + $0x88] sm:$0xff] 0.0
        %280 = vst [vmem:[%s265 + $0xa0] sm:$0xff] 0.0
        %281 = vst [vmem:[%s265 + $0xb8] sm:$0xff] 0.0
        %v282 = vld [vmem:[%s211] sm:$0xff]
        %v283 = vld [vmem:[%s211 + $0x8] sm:$0xff]
        %v284 = vld [vmem:[%s211 + $0x10] sm:$0xff]
        %v285 = vld [vmem:[%s211 + $0x18] sm:$0xff]
        %v286 = vld [vmem:[%s211 + $0x20] sm:$0xff]
        %v287 = vld [vmem:[%s211 + $0x28] sm:$0xff]
        %v288 = vld [vmem:[%s211 + $0x30] sm:$0xff]
        %v289 = vld [vmem:[%s211 + $0x38] sm:$0xff]
        %290 = vst [vmem:[%s265 + $0x8] sm:$0xff] %v282
        %291 = vst [vmem:[%s265 + $0x20] sm:$0xff] %v283
        %292 = vst [vmem:[%s265 + $0x38] sm:$0xff] %v284
        %293 = vst [vmem:[%s265 + $0x50] sm:$0xff] %v285
        %294 = vst [vmem:[%s265 + $0x68] sm:$0xff] %v286
        %295 = vst [vmem:[%s265 + $0x80] sm:$0xff] %v287
        %296 = vst [vmem:[%s265 + $0x98] sm:$0xff] %v288
        %297 = vst [vmem:[%s265 + $0xb0] sm:$0xff] %v289
        %v298 = vld [vmem:[#allocation6] sm:$0xff]
        %v299 = vld [vmem:[#allocation6 + $0x8] sm:$0xff]
        %v300 = vld [vmem:[#allocation6 + $0x10] sm:$0xff]
        %v301 = vld [vmem:[#allocation6 + $0x18] sm:$0xff]
        %v302 = vld [vmem:[#allocation6 + $0x20] sm:$0xff]
        %v303 = vld [vmem:[#allocation6 + $0x28] sm:$0xff]
        %v304 = vld [vmem:[#allocation6 + $0x30] sm:$0x1]
        %v305 = vld [vmem:[%s245] sm:$0x1]
        %v307 = vperm.slane %v305, 0
        %v309 = vld [vmem:[#allocation2 + $0x5] sm:$0xff]
        %v310 = vld [vmem:[#allocation2 + $0x1d] sm:$0xff]
        %v311 = vld [vmem:[#allocation2 + $0x35] sm:$0xff]
        %v312 = vld [vmem:[#allocation2 + $0x4d] sm:$0xff]
        %v313 = vld [vmem:[#allocation2 + $0x65] sm:$0xff]
        %v314 = vld [vmem:[#allocation2 + $0x7d] sm:$0xff]
        %v315 = vld [vmem:[#allocation2 + $0x95] sm:$0xff]
        %v316 = vld [vmem:[#allocation2 + $0xad] sm:$0xff]
        %v317 = vperm.slane %v298, 0
        %v318 = vmul.f32 %v309, %v317
        %v319 = vmul.f32 %v310, %v317
        %v320 = vmul.f32 %v311, %v317
        %v321 = vmul.f32 %v312, %v317
        %v322 = vmul.f32 %v313, %v317
        %v323 = vmul.f32 %v314, %v317
        %v324 = vmul.f32 %v315, %v317
        %v325 = vmul.f32 %v316, %v317
        %v326 = vadd.f32 %v307, %v318
        %v327 = vadd.f32 %v307, %v319
        %v328 = vadd.f32 %v307, %v320
        %v329 = vadd.f32 %v307, %v321
        %v330 = vadd.f32 %v307, %v322
        %v331 = vadd.f32 %v307, %v323
        %v332 = vadd.f32 %v307, %v324
        %v333 = vadd.f32 %v307, %v325
        %v334 = vld [vmem:[#allocation2 + $0x6] sm:$0xff]
        %v335 = vld [vmem:[#allocation2 + $0x1e] sm:$0xff]
        %v336 = vld [vmem:[#allocation2 + $0x36] sm:$0xff]
        %v337 = vld [vmem:[#allocation2 + $0x4e] sm:$0xff]
        %v338 = vld [vmem:[#allocation2 + $0x66] sm:$0xff]
        %v339 = vld [vmem:[#allocation2 + $0x7e] sm:$0xff]
        %v340 = vld [vmem:[#allocation2 + $0x96] sm:$0xff]
        %v341 = vld [vmem:[#allocation2 + $0xae] sm:$0xff]
        %v342 = vperm.slane %v298, 1
        %v343 = vmul.f32 %v334, %v342
        %v344 = vmul.f32 %v335, %v342
        %v345 = vmul.f32 %v336, %v342
        %v346 = vmul.f32 %v337, %v342
        %v347 = vmul.f32 %v338, %v342
        %v348 = vmul.f32 %v339, %v342
        %v349 = vmul.f32 %v340, %v342
        %v350 = vmul.f32 %v341, %v342
        %v351 = vadd.f32 %v326, %v343
        %v352 = vadd.f32 %v327, %v344
        %v353 = vadd.f32 %v328, %v345
        %v354 = vadd.f32 %v329, %v346
        %v355 = vadd.f32 %v330, %v347
        %v356 = vadd.f32 %v331, %v348
        %v357 = vadd.f32 %v332, %v349
        %v358 = vadd.f32 %v333, %v350
        %v359 = vld [vmem:[#allocation2 + $0x7] sm:$0xff]
        %v360 = vld [vmem:[#allocation2 + $0x1f] sm:$0xff]
        %v361 = vld [vmem:[#allocation2 + $0x37] sm:$0xff]
        %v362 = vld [vmem:[#allocation2 + $0x4f] sm:$0xff]
        %v363 = vld [vmem:[#allocation2 + $0x67] sm:$0xff]
        %v364 = vld [vmem:[#allocation2 + $0x7f] sm:$0xff]
        %v365 = vld [vmem:[#allocation2 + $0x97] sm:$0xff]
        %v366 = vld [vmem:[#allocation2 + $0xaf] sm:$0xff]
        %v367 = vperm.slane %v298, 2
        %v368 = vmul.f32 %v359, %v367
        %v369 = vmul.f32 %v360, %v367
        %v370 = vmul.f32 %v361, %v367
        %v371 = vmul.f32 %v362, %v367
        %v372 = vmul.f32 %v363, %v367
        %v373 = vmul.f32 %v364, %v367
        %v374 = vmul.f32 %v365, %v367
        %v375 = vmul.f32 %v366, %v367
        %v376 = vadd.f32 %v351, %v368
        %v377 = vadd.f32 %v352, %v369
        %v378 = vadd.f32 %v353, %v370
        %v379 = vadd.f32 %v354, %v371
        %v380 = vadd.f32 %v355, %v372
        %v381 = vadd.f32 %v356, %v373
        %v382 = vadd.f32 %v357, %v374
        %v383 = vadd.f32 %v358, %v375
        %v384 = vld [vmem:[#allocation2 + $0x8] sm:$0xff]
        %v385 = vld [vmem:[#allocation2 + $0x20] sm:$0xff]
        %v386 = vld [vmem:[#allocation2 + $0x38] sm:$0xff]
        %v387 = vld [vmem:[#allocation2 + $0x50] sm:$0xff]
        %v388 = vld [vmem:[#allocation2 + $0x68] sm:$0xff]
        %v389 = vld [vmem:[#allocation2 + $0x80] sm:$0xff]
        %v390 = vld [vmem:[#allocation2 + $0x98] sm:$0xff]
        %v391 = vld [vmem:[#allocation2 + $0xb0] sm:$0xff]
        %v392 = vperm.slane %v298, 3
        %v393 = vmul.f32 %v384, %v392
        %v394 = vmul.f32 %v385, %v392
        %v395 = vmul.f32 %v386, %v392
        %v396 = vmul.f32 %v387, %v392
        %v397 = vmul.f32 %v388, %v392
        %v398 = vmul.f32 %v389, %v392
        %v399 = vmul.f32 %v390, %v392
        %v400 = vmul.f32 %v391, %v392
        %v401 = vadd.f32 %v376, %v393
        %v402 = vadd.f32 %v377, %v394
        %v403 = vadd.f32 %v378, %v395
        %v404 = vadd.f32 %v379, %v396
        %v405 = vadd.f32 %v380, %v397
        %v406 = vadd.f32 %v381, %v398
        %v407 = vadd.f32 %v382, %v399
        %v408 = vadd.f32 %v383, %v400
        %v409 = vld [vmem:[#allocation2 + $0x9] sm:$0xff]
        %v410 = vld [vmem:[#allocation2 + $0x21] sm:$0xff]
        %v411 = vld [vmem:[#allocation2 + $0x39] sm:$0xff]
        %v412 = vld [vmem:[#allocation2 + $0x51] sm:$0xff]
        %v413 = vld [vmem:[#allocation2 + $0x69] sm:$0xff]
        %v414 = vld [vmem:[#allocation2 + $0x81] sm:$0xff]
        %v415 = vld [vmem:[#allocation2 + $0x99] sm:$0xff]
        %v416 = vld [vmem:[#allocation2 + $0xb1] sm:$0xff]
        %v417 = vperm.slane %v298, 4
        %v418 = vmul.f32 %v409, %v417
        %v419 = vmul.f32 %v410, %v417
        %v420 = vmul.f32 %v411, %v417
        %v421 = vmul.f32 %v412, %v417
        %v422 = vmul.f32 %v413, %v417
        %v423 = vmul.f32 %v414, %v417
        %v424 = vmul.f32 %v415, %v417
        %v425 = vmul.f32 %v416, %v417
        %v426 = vadd.f32 %v401, %v418
        %v427 = vadd.f32 %v402, %v419
        %v428 = vadd.f32 %v403, %v420
        %v429 = vadd.f32 %v404, %v421
        %v430 = vadd.f32 %v405, %v422
        %v431 = vadd.f32 %v406, %v423
        %v432 = vadd.f32 %v407, %v424
        %v433 = vadd.f32 %v408, %v425
        %v434 = vld [vmem:[#allocation2 + $0xa] sm:$0xff]
        %v435 = vld [vmem:[#allocation2 + $0x22] sm:$0xff]
        %v436 = vld [vmem:[#allocation2 + $0x3a] sm:$0xff]
        %v437 = vld [vmem:[#allocation2 + $0x52] sm:$0xff]
        %v438 = vld [vmem:[#allocation2 + $0x6a] sm:$0xff]
        %v439 = vld [vmem:[#allocation2 + $0x82] sm:$0xff]
        %v440 = vld [vmem:[#allocation2 + $0x9a] sm:$0xff]
        %v441 = vld [vmem:[#allocation2 + $0xb2] sm:$0xff]
        %v442 = vperm.slane %v298, 5
        %v443 = vmul.f32 %v434, %v442
        %v444 = vmul.f32 %v435, %v442
        %v445 = vmul.f32 %v436, %v442
        %v446 = vmul.f32 %v437, %v442
        %v447 = vmul.f32 %v438, %v442
        %v448 = vmul.f32 %v439, %v442
        %v449 = vmul.f32 %v440, %v442
        %v450 = vmul.f32 %v441, %v442
        %v451 = vadd.f32 %v426, %v443
        %v452 = vadd.f32 %v427, %v444
        %v453 = vadd.f32 %v428, %v445
        %v454 = vadd.f32 %v429, %v446
        %v455 = vadd.f32 %v430, %v447
        %v456 = vadd.f32 %v431, %v448
        %v457 = vadd.f32 %v432, %v449
        %v458 = vadd.f32 %v433, %v450
        %v459 = vld [vmem:[#allocation2 + $0xb] sm:$0xff]
        %v460 = vld [vmem:[#allocation2 + $0x23] sm:$0xff]
        %v461 = vld [vmem:[#allocation2 + $0x3b] sm:$0xff]
        %v462 = vld [vmem:[#allocation2 + $0x53] sm:$0xff]
        %v463 = vld [vmem:[#allocation2 + $0x6b] sm:$0xff]
        %v464 = vld [vmem:[#allocation2 + $0x83] sm:$0xff]
        %v465 = vld [vmem:[#allocation2 + $0x9b] sm:$0xff]
        %v466 = vld [vmem:[#allocation2 + $0xb3] sm:$0xff]
        %v467 = vperm.slane %v298, 6
        %v468 = vmul.f32 %v459, %v467
        %v469 = vmul.f32 %v460, %v467
        %v470 = vmul.f32 %v461, %v467
        %v471 = vmul.f32 %v462, %v467
        %v472 = vmul.f32 %v463, %v467
        %v473 = vmul.f32 %v464, %v467
        %v474 = vmul.f32 %v465, %v467
        %v475 = vmul.f32 %v466, %v467
        %v476 = vadd.f32 %v451, %v468
        %v477 = vadd.f32 %v452, %v469
        %v478 = vadd.f32 %v453, %v470
        %v479 = vadd.f32 %v454, %v471
        %v480 = vadd.f32 %v455, %v472
        %v481 = vadd.f32 %v456, %v473
        %v482 = vadd.f32 %v457, %v474
        %v483 = vadd.f32 %v458, %v475
        %s484 = scalar_lea.vmem [#allocation2], 24
        %v485 = vld [vmem:[%s484 + $0x5] sm:$0xff]
        %v486 = vld [vmem:[%s484 + $0x1d] sm:$0xff]
        %v487 = vld [vmem:[%s484 + $0x35] sm:$0xff]
        %v488 = vld [vmem:[%s484 + $0x4d] sm:$0xff]
        %v489 = vld [vmem:[%s484 + $0x65] sm:$0xff]
        %v490 = vld [vmem:[%s484 + $0x7d] sm:$0xff]
        %v491 = vld [vmem:[%s484 + $0x95] sm:$0xff]
        %v492 = vld [vmem:[%s484 + $0xad] sm:$0xff]
        %v493 = vperm.slane %v298, 7
        %v494 = vmul.f32 %v485, %v493
        %v495 = vmul.f32 %v486, %v493
        %v496 = vmul.f32 %v487, %v493
        %v497 = vmul.f32 %v488, %v493
        %v498 = vmul.f32 %v489, %v493
        %v499 = vmul.f32 %v490, %v493
        %v500 = vmul.f32 %v491, %v493
        %v501 = vmul.f32 %v492, %v493
        %v502 = vadd.f32 %v476, %v494
        %v503 = vadd.f32 %v477, %v495
        %v504 = vadd.f32 %v478, %v496
        %v505 = vadd.f32 %v479, %v497
        %v506 = vadd.f32 %v480, %v498
        %v507 = vadd.f32 %v481, %v499
        %v508 = vadd.f32 %v482, %v500
        %v509 = vadd.f32 %v483, %v501
        %v510 = vld [vmem:[%s484 + $0x6] sm:$0xff]
        %v511 = vld [vmem:[%s484 + $0x1e] sm:$0xff]
        %v512 = vld [vmem:[%s484 + $0x36] sm:$0xff]
        %v513 = vld [vmem:[%s484 + $0x4e] sm:$0xff]
        %v514 = vld [vmem:[%s484 + $0x66] sm:$0xff]
        %v515 = vld [vmem:[%s484 + $0x7e] sm:$0xff]
        %v516 = vld [vmem:[%s484 + $0x96] sm:$0xff]
        %v517 = vld [vmem:[%s484 + $0xae] sm:$0xff]
        %v518 = vperm.slane %v299, 0
        %v519 = vmul.f32 %v510, %v518
        %v520 = vmul.f32 %v511, %v518
        %v521 = vmul.f32 %v512, %v518
        %v522 = vmul.f32 %v513, %v518
        %v523 = vmul.f32 %v514, %v518
        %v524 = vmul.f32 %v515, %v518
        %v525 = vmul.f32 %v516, %v518
        %v526 = vmul.f32 %v517, %v518
        %v527 = vadd.f32 %v502, %v519
        %v528 = vadd.f32 %v503, %v520
        %v529 = vadd.f32 %v504, %v521
        %v530 = vadd.f32 %v505, %v522
        %v531 = vadd.f32 %v506, %v523
        %v532 = vadd.f32 %v507, %v524
        %v533 = vadd.f32 %v508, %v525
        %v534 = vadd.f32 %v509, %v526
        %v535 = vld [vmem:[%s484 + $0x7] sm:$0xff]
        %v536 = vld [vmem:[%s484 + $0x1f] sm:$0xff]
        %v537 = vld [vmem:[%s484 + $0x37] sm:$0xff]
        %v538 = vld [vmem:[%s484 + $0x4f] sm:$0xff]
        %v539 = vld [vmem:[%s484 + $0x67] sm:$0xff]
        %v540 = vld [vmem:[%s484 + $0x7f] sm:$0xff]
        %v541 = vld [vmem:[%s484 + $0x97] sm:$0xff]
        %v542 = vld [vmem:[%s484 + $0xaf] sm:$0xff]
        %v543 = vperm.slane %v299, 1
        %v544 = vmul.f32 %v535, %v543
        %v545 = vmul.f32 %v536, %v543
        %v546 = vmul.f32 %v537, %v543
        %v547 = vmul.f32 %v538, %v543
        %v548 = vmul.f32 %v539, %v543
        %v549 = vmul.f32 %v540, %v543
        %v550 = vmul.f32 %v541, %v543
        %v551 = vmul.f32 %v542, %v543
        %v552 = vadd.f32 %v527, %v544
        %v553 = vadd.f32 %v528, %v545
        %v554 = vadd.f32 %v529, %v546
        %v555 = vadd.f32 %v530, %v547
        %v556 = vadd.f32 %v531, %v548
        %v557 = vadd.f32 %v532, %v549
        %v558 = vadd.f32 %v533, %v550
        %v559 = vadd.f32 %v534, %v551
        %v560 = vld [vmem:[%s484 + $0x8] sm:$0xff]
        %v561 = vld [vmem:[%s484 + $0x20] sm:$0xff]
        %v562 = vld [vmem:[%s484 + $0x38] sm:$0xff]
        %v563 = vld [vmem:[%s484 + $0x50] sm:$0xff]
        %v564 = vld [vmem:[%s484 + $0x68] sm:$0xff]
        %v565 = vld [vmem:[%s484 + $0x80] sm:$0xff]
        %v566 = vld [vmem:[%s484 + $0x98] sm:$0xff]
        %v567 = vld [vmem:[%s484 + $0xb0] sm:$0xff]
        %v568 = vperm.slane %v299, 2
        %v569 = vmul.f32 %v560, %v568
        %v570 = vmul.f32 %v561, %v568
        %v571 = vmul.f32 %v562, %v568
        %v572 = vmul.f32 %v563, %v568
        %v573 = vmul.f32 %v564, %v568
        %v574 = vmul.f32 %v565, %v568
        %v575 = vmul.f32 %v566, %v568
        %v576 = vmul.f32 %v567, %v568
        %v577 = vadd.f32 %v552, %v569
        %v578 = vadd.f32 %v553, %v570
        %v579 = vadd.f32 %v554, %v571
        %v580 = vadd.f32 %v555, %v572
        %v581 = vadd.f32 %v556, %v573
        %v582 = vadd.f32 %v557, %v574
        %v583 = vadd.f32 %v558, %v575
        %v584 = vadd.f32 %v559, %v576
        %v585 = vld [vmem:[%s484 + $0x9] sm:$0xff]
        %v586 = vld [vmem:[%s484 + $0x21] sm:$0xff]
        %v587 = vld [vmem:[%s484 + $0x39] sm:$0xff]
        %v588 = vld [vmem:[%s484 + $0x51] sm:$0xff]
        %v589 = vld [vmem:[%s484 + $0x69] sm:$0xff]
        %v590 = vld [vmem:[%s484 + $0x81] sm:$0xff]
        %v591 = vld [vmem:[%s484 + $0x99] sm:$0xff]
        %v592 = vld [vmem:[%s484 + $0xb1] sm:$0xff]
        %v593 = vperm.slane %v299, 3
        %v594 = vmul.f32 %v585, %v593
        %v595 = vmul.f32 %v586, %v593
        %v596 = vmul.f32 %v587, %v593
        %v597 = vmul.f32 %v588, %v593
        %v598 = vmul.f32 %v589, %v593
        %v599 = vmul.f32 %v590, %v593
        %v600 = vmul.f32 %v591, %v593
        %v601 = vmul.f32 %v592, %v593
        %v602 = vadd.f32 %v577, %v594
        %v603 = vadd.f32 %v578, %v595
        %v604 = vadd.f32 %v579, %v596
        %v605 = vadd.f32 %v580, %v597
        %v606 = vadd.f32 %v581, %v598
        %v607 = vadd.f32 %v582, %v599
        %v608 = vadd.f32 %v583, %v600
        %v609 = vadd.f32 %v584, %v601
        %v610 = vld [vmem:[%s484 + $0xa] sm:$0xff]
        %v611 = vld [vmem:[%s484 + $0x22] sm:$0xff]
        %v612 = vld [vmem:[%s484 + $0x3a] sm:$0xff]
        %v613 = vld [vmem:[%s484 + $0x52] sm:$0xff]
        %v614 = vld [vmem:[%s484 + $0x6a] sm:$0xff]
        %v615 = vld [vmem:[%s484 + $0x82] sm:$0xff]
        %v616 = vld [vmem:[%s484 + $0x9a] sm:$0xff]
        %v617 = vld [vmem:[%s484 + $0xb2] sm:$0xff]
        %v618 = vperm.slane %v299, 4
        %v619 = vmul.f32 %v610, %v618
        %v620 = vmul.f32 %v611, %v618
        %v621 = vmul.f32 %v612, %v618
        %v622 = vmul.f32 %v613, %v618
        %v623 = vmul.f32 %v614, %v618
        %v624 = vmul.f32 %v615, %v618
        %v625 = vmul.f32 %v616, %v618
        %v626 = vmul.f32 %v617, %v618
        %v627 = vadd.f32 %v602, %v619
        %v628 = vadd.f32 %v603, %v620
        %v629 = vadd.f32 %v604, %v621
        %v630 = vadd.f32 %v605, %v622
        %v631 = vadd.f32 %v606, %v623
        %v632 = vadd.f32 %v607, %v624
        %v633 = vadd.f32 %v608, %v625
        %v634 = vadd.f32 %v609, %v626
        %v635 = vld [vmem:[%s484 + $0xb] sm:$0xff]
        %v636 = vld [vmem:[%s484 + $0x23] sm:$0xff]
        %v637 = vld [vmem:[%s484 + $0x3b] sm:$0xff]
        %v638 = vld [vmem:[%s484 + $0x53] sm:$0xff]
        %v639 = vld [vmem:[%s484 + $0x6b] sm:$0xff]
        %v640 = vld [vmem:[%s484 + $0x83] sm:$0xff]
        %v641 = vld [vmem:[%s484 + $0x9b] sm:$0xff]
        %v642 = vld [vmem:[%s484 + $0xb3] sm:$0xff]
        %v643 = vperm.slane %v299, 5
        %v644 = vmul.f32 %v635, %v643
        %v645 = vmul.f32 %v636, %v643
        %v646 = vmul.f32 %v637, %v643
        %v647 = vmul.f32 %v638, %v643
        %v648 = vmul.f32 %v639, %v643
        %v649 = vmul.f32 %v640, %v643
        %v650 = vmul.f32 %v641, %v643
        %v651 = vmul.f32 %v642, %v643
        %v652 = vadd.f32 %v627, %v644
        %v653 = vadd.f32 %v628, %v645
        %v654 = vadd.f32 %v629, %v646
        %v655 = vadd.f32 %v630, %v647
        %v656 = vadd.f32 %v631, %v648
        %v657 = vadd.f32 %v632, %v649
        %v658 = vadd.f32 %v633, %v650
        %v659 = vadd.f32 %v634, %v651
        %s660 = scalar_lea.vmem [#allocation2], 48
        %v661 = vld [vmem:[%s660 + $0x5] sm:$0xff]
        %v662 = vld [vmem:[%s660 + $0x1d] sm:$0xff]
        %v663 = vld [vmem:[%s660 + $0x35] sm:$0xff]
        %v664 = vld [vmem:[%s660 + $0x4d] sm:$0xff]
        %v665 = vld [vmem:[%s660 + $0x65] sm:$0xff]
        %v666 = vld [vmem:[%s660 + $0x7d] sm:$0xff]
        %v667 = vld [vmem:[%s660 + $0x95] sm:$0xff]
        %v668 = vld [vmem:[%s660 + $0xad] sm:$0xff]
        %v669 = vperm.slane %v299, 6
        %v670 = vmul.f32 %v661, %v669
        %v671 = vmul.f32 %v662, %v669
        %v672 = vmul.f32 %v663, %v669
        %v673 = vmul.f32 %v664, %v669
        %v674 = vmul.f32 %v665, %v669
        %v675 = vmul.f32 %v666, %v669
        %v676 = vmul.f32 %v667, %v669
        %v677 = vmul.f32 %v668, %v669
        %v678 = vadd.f32 %v652, %v670
        %v679 = vadd.f32 %v653, %v671
        %v680 = vadd.f32 %v654, %v672
        %v681 = vadd.f32 %v655, %v673
        %v682 = vadd.f32 %v656, %v674
        %v683 = vadd.f32 %v657, %v675
        %v684 = vadd.f32 %v658, %v676
        %v685 = vadd.f32 %v659, %v677
        %v686 = vld [vmem:[%s660 + $0x6] sm:$0xff]
        %v687 = vld [vmem:[%s660 + $0x1e] sm:$0xff]
        %v688 = vld [vmem:[%s660 + $0x36] sm:$0xff]
        %v689 = vld [vmem:[%s660 + $0x4e] sm:$0xff]
        %v690 = vld [vmem:[%s660 + $0x66] sm:$0xff]
        %v691 = vld [vmem:[%s660 + $0x7e] sm:$0xff]
        %v692 = vld [vmem:[%s660 + $0x96] sm:$0xff]
        %v693 = vld [vmem:[%s660 + $0xae] sm:$0xff]
        %v694 = vperm.slane %v299, 7
        %v695 = vmul.f32 %v686, %v694
        %v696 = vmul.f32 %v687, %v694
        %v697 = vmul.f32 %v688, %v694
        %v698 = vmul.f32 %v689, %v694
        %v699 = vmul.f32 %v690, %v694
        %v700 = vmul.f32 %v691, %v694
        %v701 = vmul.f32 %v692, %v694
        %v702 = vmul.f32 %v693, %v694
        %v703 = vadd.f32 %v678, %v695
        %v704 = vadd.f32 %v679, %v696
        %v705 = vadd.f32 %v680, %v697
        %v706 = vadd.f32 %v681, %v698
        %v707 = vadd.f32 %v682, %v699
        %v708 = vadd.f32 %v683, %v700
        %v709 = vadd.f32 %v684, %v701
        %v710 = vadd.f32 %v685, %v702
        %v711 = vld [vmem:[%s660 + $0x7] sm:$0xff]
        %v712 = vld [vmem:[%s660 + $0x1f] sm:$0xff]
        %v713 = vld [vmem:[%s660 + $0x37] sm:$0xff]
        %v714 = vld [vmem:[%s660 + $0x4f] sm:$0xff]
        %v715 = vld [vmem:[%s660 + $0x67] sm:$0xff]
        %v716 = vld [vmem:[%s660 + $0x7f] sm:$0xff]
        %v717 = vld [vmem:[%s660 + $0x97] sm:$0xff]
        %v718 = vld [vmem:[%s660 + $0xaf] sm:$0xff]
        %v719 = vperm.slane %v300, 0
        %v720 = vmul.f32 %v711, %v719
        %v721 = vmul.f32 %v712, %v719
        %v722 = vmul.f32 %v713, %v719
        %v723 = vmul.f32 %v714, %v719
        %v724 = vmul.f32 %v715, %v719
        %v725 = vmul.f32 %v716, %v719
        %v726 = vmul.f32 %v717, %v719
        %v727 = vmul.f32 %v718, %v719
        %v728 = vadd.f32 %v703, %v720
        %v729 = vadd.f32 %v704, %v721
        %v730 = vadd.f32 %v705, %v722
        %v731 = vadd.f32 %v706, %v723
        %v732 = vadd.f32 %v707, %v724
        %v733 = vadd.f32 %v708, %v725
        %v734 = vadd.f32 %v709, %v726
        %v735 = vadd.f32 %v710, %v727
        %v736 = vld [vmem:[%s660 + $0x8] sm:$0xff]
        %v737 = vld [vmem:[%s660 + $0x20] sm:$0xff]
        %v738 = vld [vmem:[%s660 + $0x38] sm:$0xff]
        %v739 = vld [vmem:[%s660 + $0x50] sm:$0xff]
        %v740 = vld [vmem:[%s660 + $0x68] sm:$0xff]
        %v741 = vld [vmem:[%s660 + $0x80] sm:$0xff]
        %v742 = vld [vmem:[%s660 + $0x98] sm:$0xff]
        %v743 = vld [vmem:[%s660 + $0xb0] sm:$0xff]
        %v744 = vperm.slane %v300, 1
        %v745 = vmul.f32 %v736, %v744
        %v746 = vmul.f32 %v737, %v744
        %v747 = vmul.f32 %v738, %v744
        %v748 = vmul.f32 %v739, %v744
        %v749 = vmul.f32 %v740, %v744
        %v750 = vmul.f32 %v741, %v744
        %v751 = vmul.f32 %v742, %v744
        %v752 = vmul.f32 %v743, %v744
        %v753 = vadd.f32 %v728, %v745
        %v754 = vadd.f32 %v729, %v746
        %v755 = vadd.f32 %v730, %v747
        %v756 = vadd.f32 %v731, %v748
        %v757 = vadd.f32 %v732, %v749
        %v758 = vadd.f32 %v733, %v750
        %v759 = vadd.f32 %v734, %v751
        %v760 = vadd.f32 %v735, %v752
        %v761 = vld [vmem:[%s660 + $0x9] sm:$0xff]
        %v762 = vld [vmem:[%s660 + $0x21] sm:$0xff]
        %v763 = vld [vmem:[%s660 + $0x39] sm:$0xff]
        %v764 = vld [vmem:[%s660 + $0x51] sm:$0xff]
        %v765 = vld [vmem:[%s660 + $0x69] sm:$0xff]
        %v766 = vld [vmem:[%s660 + $0x81] sm:$0xff]
        %v767 = vld [vmem:[%s660 + $0x99] sm:$0xff]
        %v768 = vld [vmem:[%s660 + $0xb1] sm:$0xff]
        %v769 = vperm.slane %v300, 2
        %v770 = vmul.f32 %v761, %v769
        %v771 = vmul.f32 %v762, %v769
        %v772 = vmul.f32 %v763, %v769
        %v773 = vmul.f32 %v764, %v769
        %v774 = vmul.f32 %v765, %v769
        %v775 = vmul.f32 %v766, %v769
        %v776 = vmul.f32 %v767, %v769
        %v777 = vmul.f32 %v768, %v769
        %v778 = vadd.f32 %v753, %v770
        %v779 = vadd.f32 %v754, %v771
        %v780 = vadd.f32 %v755, %v772
        %v781 = vadd.f32 %v756, %v773
        %v782 = vadd.f32 %v757, %v774
        %v783 = vadd.f32 %v758, %v775
        %v784 = vadd.f32 %v759, %v776
        %v785 = vadd.f32 %v760, %v777
        %v786 = vld [vmem:[%s660 + $0xa] sm:$0xff]
        %v787 = vld [vmem:[%s660 + $0x22] sm:$0xff]
        %v788 = vld [vmem:[%s660 + $0x3a] sm:$0xff]
        %v789 = vld [vmem:[%s660 + $0x52] sm:$0xff]
        %v790 = vld [vmem:[%s660 + $0x6a] sm:$0xff]
        %v791 = vld [vmem:[%s660 + $0x82] sm:$0xff]
        %v792 = vld [vmem:[%s660 + $0x9a] sm:$0xff]
        %v793 = vld [vmem:[%s660 + $0xb2] sm:$0xff]
        %v794 = vperm.slane %v300, 3
        %v795 = vmul.f32 %v786, %v794
        %v796 = vmul.f32 %v787, %v794
        %v797 = vmul.f32 %v788, %v794
        %v798 = vmul.f32 %v789, %v794
        %v799 = vmul.f32 %v790, %v794
        %v800 = vmul.f32 %v791, %v794
        %v801 = vmul.f32 %v792, %v794
        %v802 = vmul.f32 %v793, %v794
        %v803 = vadd.f32 %v778, %v795
        %v804 = vadd.f32 %v779, %v796
        %v805 = vadd.f32 %v780, %v797
        %v806 = vadd.f32 %v781, %v798
        %v807 = vadd.f32 %v782, %v799
        %v808 = vadd.f32 %v783, %v800
        %v809 = vadd.f32 %v784, %v801
        %v810 = vadd.f32 %v785, %v802
        %v811 = vld [vmem:[%s660 + $0xb] sm:$0xff]
        %v812 = vld [vmem:[%s660 + $0x23] sm:$0xff]
        %v813 = vld [vmem:[%s660 + $0x3b] sm:$0xff]
        %v814 = vld [vmem:[%s660 + $0x53] sm:$0xff]
        %v815 = vld [vmem:[%s660 + $0x6b] sm:$0xff]
        %v816 = vld [vmem:[%s660 + $0x83] sm:$0xff]
        %v817 = vld [vmem:[%s660 + $0x9b] sm:$0xff]
        %v818 = vld [vmem:[%s660 + $0xb3] sm:$0xff]
        %v819 = vperm.slane %v300, 4
        %v820 = vmul.f32 %v811, %v819
        %v821 = vmul.f32 %v812, %v819
        %v822 = vmul.f32 %v813, %v819
        %v823 = vmul.f32 %v814, %v819
        %v824 = vmul.f32 %v815, %v819
        %v825 = vmul.f32 %v816, %v819
        %v826 = vmul.f32 %v817, %v819
        %v827 = vmul.f32 %v818, %v819
        %v828 = vadd.f32 %v803, %v820
        %v829 = vadd.f32 %v804, %v821
        %v830 = vadd.f32 %v805, %v822
        %v831 = vadd.f32 %v806, %v823
        %v832 = vadd.f32 %v807, %v824
        %v833 = vadd.f32 %v808, %v825
        %v834 = vadd.f32 %v809, %v826
        %v835 = vadd.f32 %v810, %v827
        %v836 = vld [vmem:[%s265 + $0x5] sm:$0xff]
        %v837 = vld [vmem:[%s265 + $0x1d] sm:$0xff]
        %v838 = vld [vmem:[%s265 + $0x35] sm:$0xff]
        %v839 = vld [vmem:[%s265 + $0x4d] sm:$0xff]
        %v840 = vld [vmem:[%s265 + $0x65] sm:$0xff]
        %v841 = vld [vmem:[%s265 + $0x7d] sm:$0xff]
        %v842 = vld [vmem:[%s265 + $0x95] sm:$0xff]
        %v843 = vld [vmem:[%s265 + $0xad] sm:$0xff]
        %v844 = vperm.slane %v300, 5
        %v845 = vmul.f32 %v836, %v844
        %v846 = vmul.f32 %v837, %v844
        %v847 = vmul.f32 %v838, %v844
        %v848 = vmul.f32 %v839, %v844
        %v849 = vmul.f32 %v840, %v844
        %v850 = vmul.f32 %v841, %v844
        %v851 = vmul.f32 %v842, %v844
        %v852 = vmul.f32 %v843, %v844
        %v853 = vadd.f32 %v828, %v845
        %v854 = vadd.f32 %v829, %v846
        %v855 = vadd.f32 %v830, %v847
        %v856 = vadd.f32 %v831, %v848
        %v857 = vadd.f32 %v832, %v849
        %v858 = vadd.f32 %v833, %v850
        %v859 = vadd.f32 %v834, %v851
        %v860 = vadd.f32 %v835, %v852
        %v861 = vld [vmem:[%s265 + $0x6] sm:$0xff]
        %v862 = vld [vmem:[%s265 + $0x1e] sm:$0xff]
        %v863 = vld [vmem:[%s265 + $0x36] sm:$0xff]
        %v864 = vld [vmem:[%s265 + $0x4e] sm:$0xff]
        %v865 = vld [vmem:[%s265 + $0x66] sm:$0xff]
        %v866 = vld [vmem:[%s265 + $0x7e] sm:$0xff]
        %v867 = vld [vmem:[%s265 + $0x96] sm:$0xff]
        %v868 = vld [vmem:[%s265 + $0xae] sm:$0xff]
        %v869 = vperm.slane %v300, 6
        %v870 = vmul.f32 %v861, %v869
        %v871 = vmul.f32 %v862, %v869
        %v872 = vmul.f32 %v863, %v869
        %v873 = vmul.f32 %v864, %v869
        %v874 = vmul.f32 %v865, %v869
        %v875 = vmul.f32 %v866, %v869
        %v876 = vmul.f32 %v867, %v869
        %v877 = vmul.f32 %v868, %v869
        %v878 = vadd.f32 %v853, %v870
        %v879 = vadd.f32 %v854, %v871
        %v880 = vadd.f32 %v855, %v872
        %v881 = vadd.f32 %v856, %v873
        %v882 = vadd.f32 %v857, %v874
        %v883 = vadd.f32 %v858, %v875
        %v884 = vadd.f32 %v859, %v876
        %v885 = vadd.f32 %v860, %v877
        %v886 = vld [vmem:[%s265 + $0x7] sm:$0xff]
        %v887 = vld [vmem:[%s265 + $0x1f] sm:$0xff]
        %v888 = vld [vmem:[%s265 + $0x37] sm:$0xff]
        %v889 = vld [vmem:[%s265 + $0x4f] sm:$0xff]
        %v890 = vld [vmem:[%s265 + $0x67] sm:$0xff]
        %v891 = vld [vmem:[%s265 + $0x7f] sm:$0xff]
        %v892 = vld [vmem:[%s265 + $0x97] sm:$0xff]
        %v893 = vld [vmem:[%s265 + $0xaf] sm:$0xff]
        %v894 = vperm.slane %v300, 7
        %v895 = vmul.f32 %v886, %v894
        %v896 = vmul.f32 %v887, %v894
        %v897 = vmul.f32 %v888, %v894
        %v898 = vmul.f32 %v889, %v894
        %v899 = vmul.f32 %v890, %v894
        %v900 = vmul.f32 %v891, %v894
        %v901 = vmul.f32 %v892, %v894
        %v902 = vmul.f32 %v893, %v894
        %v903 = vadd.f32 %v878, %v895
        %v904 = vadd.f32 %v879, %v896
        %v905 = vadd.f32 %v880, %v897
        %v906 = vadd.f32 %v881, %v898
        %v907 = vadd.f32 %v882, %v899
        %v908 = vadd.f32 %v883, %v900
        %v909 = vadd.f32 %v884, %v901
        %v910 = vadd.f32 %v885, %v902
        %v911 = vld [vmem:[%s265 + $0x8] sm:$0xff]
        %v912 = vld [vmem:[%s265 + $0x20] sm:$0xff]
        %v913 = vld [vmem:[%s265 + $0x38] sm:$0xff]
        %v914 = vld [vmem:[%s265 + $0x50] sm:$0xff]
        %v915 = vld [vmem:[%s265 + $0x68] sm:$0xff]
        %v916 = vld [vmem:[%s265 + $0x80] sm:$0xff]
        %v917 = vld [vmem:[%s265 + $0x98] sm:$0xff]
        %v918 = vld [vmem:[%s265 + $0xb0] sm:$0xff]
        %v919 = vperm.slane %v301, 0
        %v920 = vmul.f32 %v911, %v919
        %v921 = vmul.f32 %v912, %v919
        %v922 = vmul.f32 %v913, %v919
        %v923 = vmul.f32 %v914, %v919
        %v924 = vmul.f32 %v915, %v919
        %v925 = vmul.f32 %v916, %v919
        %v926 = vmul.f32 %v917, %v919
        %v927 = vmul.f32 %v918, %v919
        %v928 = vadd.f32 %v903, %v920
        %v929 = vadd.f32 %v904, %v921
        %v930 = vadd.f32 %v905, %v922
        %v931 = vadd.f32 %v906, %v923
        %v932 = vadd.f32 %v907, %v924
        %v933 = vadd.f32 %v908, %v925
        %v934 = vadd.f32 %v909, %v926
        %v935 = vadd.f32 %v910, %v927
        %v936 = vld [vmem:[%s265 + $0x9] sm:$0xff]
        %v937 = vld [vmem:[%s265 + $0x21] sm:$0xff]
        %v938 = vld [vmem:[%s265 + $0x39] sm:$0xff]
        %v939 = vld [vmem:[%s265 + $0x51] sm:$0xff]
        %v940 = vld [vmem:[%s265 + $0x69] sm:$0xff]
        %v941 = vld [vmem:[%s265 + $0x81] sm:$0xff]
        %v942 = vld [vmem:[%s265 + $0x99] sm:$0xff]
        %v943 = vld [vmem:[%s265 + $0xb1] sm:$0xff]
        %v944 = vperm.slane %v301, 1
        %v945 = vmul.f32 %v936, %v944
        %v946 = vmul.f32 %v937, %v944
        %v947 = vmul.f32 %v938, %v944
        %v948 = vmul.f32 %v939, %v944
        %v949 = vmul.f32 %v940, %v944
        %v950 = vmul.f32 %v941, %v944
        %v951 = vmul.f32 %v942, %v944
        %v952 = vmul.f32 %v943, %v944
        %v953 = vadd.f32 %v928, %v945
        %v954 = vadd.f32 %v929, %v946
        %v955 = vadd.f32 %v930, %v947
        %v956 = vadd.f32 %v931, %v948
        %v957 = vadd.f32 %v932, %v949
        %v958 = vadd.f32 %v933, %v950
        %v959 = vadd.f32 %v934, %v951
        %v960 = vadd.f32 %v935, %v952
        %v961 = vld [vmem:[%s265 + $0xa] sm:$0xff]
        %v962 = vld [vmem:[%s265 + $0x22] sm:$0xff]
        %v963 = vld [vmem:[%s265 + $0x3a] sm:$0xff]
        %v964 = vld [vmem:[%s265 + $0x52] sm:$0xff]
        %v965 = vld [vmem:[%s265 + $0x6a] sm:$0xff]
        %v966 = vld [vmem:[%s265 + $0x82] sm:$0xff]
        %v967 = vld [vmem:[%s265 + $0x9a] sm:$0xff]
        %v968 = vld [vmem:[%s265 + $0xb2] sm:$0xff]
        %v969 = vperm.slane %v301, 2
        %v970 = vmul.f32 %v961, %v969
        %v971 = vmul.f32 %v962, %v969
        %v972 = vmul.f32 %v963, %v969
        %v973 = vmul.f32 %v964, %v969
        %v974 = vmul.f32 %v965, %v969
        %v975 = vmul.f32 %v966, %v969
        %v976 = vmul.f32 %v967, %v969
        %v977 = vmul.f32 %v968, %v969
        %v978 = vadd.f32 %v953, %v970
        %v979 = vadd.f32 %v954, %v971
        %v980 = vadd.f32 %v955, %v972
        %v981 = vadd.f32 %v956, %v973
        %v982 = vadd.f32 %v957, %v974
        %v983 = vadd.f32 %v958, %v975
        %v984 = vadd.f32 %v959, %v976
        %v985 = vadd.f32 %v960, %v977
        %v986 = vld [vmem:[%s265 + $0xb] sm:$0xff]
        %v987 = vld [vmem:[%s265 + $0x23] sm:$0xff]
        %v988 = vld [vmem:[%s265 + $0x3b] sm:$0xff]
        %v989 = vld [vmem:[%s265 + $0x53] sm:$0xff]
        %v990 = vld [vmem:[%s265 + $0x6b] sm:$0xff]
        %v991 = vld [vmem:[%s265 + $0x83] sm:$0xff]
        %v992 = vld [vmem:[%s265 + $0x9b] sm:$0xff]
        %v993 = vld [vmem:[%s265 + $0xb3] sm:$0xff]
        %v994 = vperm.slane %v301, 3
        %v995 = vmul.f32 %v986, %v994
        %v996 = vmul.f32 %v987, %v994
        %v997 = vmul.f32 %v988, %v994
        %v998 = vmul.f32 %v989, %v994
        %v999 = vmul.f32 %v990, %v994
        %v1000 = vmul.f32 %v991, %v994
        %v1001 = vmul.f32 %v992, %v994
        %v1002 = vmul.f32 %v993, %v994
        %v1003 = vadd.f32 %v978, %v995
        %v1004 = vadd.f32 %v979, %v996
        %v1005 = vadd.f32 %v980, %v997
        %v1006 = vadd.f32 %v981, %v998
        %v1007 = vadd.f32 %v982, %v999
        %v1008 = vadd.f32 %v983, %v1000
        %v1009 = vadd.f32 %v984, %v1001
        %v1010 = vadd.f32 %v985, %v1002
        %s1011 = scalar_lea.vmem [#allocation2], 96
        %v1012 = vld [vmem:[%s1011 + $0x5] sm:$0xff]
        %v1013 = vld [vmem:[%s1011 + $0x1d] sm:$0xff]
        %v1014 = vld [vmem:[%s1011 + $0x35] sm:$0xff]
        %v1015 = vld [vmem:[%s1011 + $0x4d] sm:$0xff]
        %v1016 = vld [vmem:[%s1011 + $0x65] sm:$0xff]
        %v1017 = vld [vmem:[%s1011 + $0x7d] sm:$0xff]
        %v1018 = vld [vmem:[%s1011 + $0x95] sm:$0xff]
        %v1019 = vld [vmem:[%s1011 + $0xad] sm:$0xff]
        %v1020 = vperm.slane %v301, 4
        %v1021 = vmul.f32 %v1012, %v1020
        %v1022 = vmul.f32 %v1013, %v1020
        %v1023 = vmul.f32 %v1014, %v1020
        %v1024 = vmul.f32 %v1015, %v1020
        %v1025 = vmul.f32 %v1016, %v1020
        %v1026 = vmul.f32 %v1017, %v1020
        %v1027 = vmul.f32 %v1018, %v1020
        %v1028 = vmul.f32 %v1019, %v1020
        %v1029 = vadd.f32 %v1003, %v1021
        %v1030 = vadd.f32 %v1004, %v1022
        %v1031 = vadd.f32 %v1005, %v1023
        %v1032 = vadd.f32 %v1006, %v1024
        %v1033 = vadd.f32 %v1007, %v1025
        %v1034 = vadd.f32 %v1008, %v1026
        %v1035 = vadd.f32 %v1009, %v1027
        %v1036 = vadd.f32 %v1010, %v1028
        %v1037 = vld [vmem:[%s1011 + $0x6] sm:$0xff]
        %v1038 = vld [vmem:[%s1011 + $0x1e] sm:$0xff]
        %v1039 = vld [vmem:[%s1011 + $0x36] sm:$0xff]
        %v1040 = vld [vmem:[%s1011 + $0x4e] sm:$0xff]
        %v1041 = vld [vmem:[%s1011 + $0x66] sm:$0xff]
        %v1042 = vld [vmem:[%s1011 + $0x7e] sm:$0xff]
        %v1043 = vld [vmem:[%s1011 + $0x96] sm:$0xff]
        %v1044 = vld [vmem:[%s1011 + $0xae] sm:$0xff]
        %v1045 = vperm.slane %v301, 5
        %v1046 = vmul.f32 %v1037, %v1045
        %v1047 = vmul.f32 %v1038, %v1045
        %v1048 = vmul.f32 %v1039, %v1045
        %v1049 = vmul.f32 %v1040, %v1045
        %v1050 = vmul.f32 %v1041, %v1045
        %v1051 = vmul.f32 %v1042, %v1045
        %v1052 = vmul.f32 %v1043, %v1045
        %v1053 = vmul.f32 %v1044, %v1045
        %v1054 = vadd.f32 %v1029, %v1046
        %v1055 = vadd.f32 %v1030, %v1047
        %v1056 = vadd.f32 %v1031, %v1048
        %v1057 = vadd.f32 %v1032, %v1049
        %v1058 = vadd.f32 %v1033, %v1050
        %v1059 = vadd.f32 %v1034, %v1051
        %v1060 = vadd.f32 %v1035, %v1052
        %v1061 = vadd.f32 %v1036, %v1053
        %v1062 = vld [vmem:[%s1011 + $0x7] sm:$0xff]
        %v1063 = vld [vmem:[%s1011 + $0x1f] sm:$0xff]
        %v1064 = vld [vmem:[%s1011 + $0x37] sm:$0xff]
        %v1065 = vld [vmem:[%s1011 + $0x4f] sm:$0xff]
        %v1066 = vld [vmem:[%s1011 + $0x67] sm:$0xff]
        %v1067 = vld [vmem:[%s1011 + $0x7f] sm:$0xff]
        %v1068 = vld [vmem:[%s1011 + $0x97] sm:$0xff]
        %v1069 = vld [vmem:[%s1011 + $0xaf] sm:$0xff]
        %v1070 = vperm.slane %v301, 6
        %v1071 = vmul.f32 %v1062, %v1070
        %v1072 = vmul.f32 %v1063, %v1070
        %v1073 = vmul.f32 %v1064, %v1070
        %v1074 = vmul.f32 %v1065, %v1070
        %v1075 = vmul.f32 %v1066, %v1070
        %v1076 = vmul.f32 %v1067, %v1070
        %v1077 = vmul.f32 %v1068, %v1070
        %v1078 = vmul.f32 %v1069, %v1070
        %v1079 = vadd.f32 %v1054, %v1071
        %v1080 = vadd.f32 %v1055, %v1072
        %v1081 = vadd.f32 %v1056, %v1073
        %v1082 = vadd.f32 %v1057, %v1074
        %v1083 = vadd.f32 %v1058, %v1075
        %v1084 = vadd.f32 %v1059, %v1076
        %v1085 = vadd.f32 %v1060, %v1077
        %v1086 = vadd.f32 %v1061, %v1078
        %v1087 = vld [vmem:[%s1011 + $0x8] sm:$0xff]
        %v1088 = vld [vmem:[%s1011 + $0x20] sm:$0xff]
        %v1089 = vld [vmem:[%s1011 + $0x38] sm:$0xff]
        %v1090 = vld [vmem:[%s1011 + $0x50] sm:$0xff]
        %v1091 = vld [vmem:[%s1011 + $0x68] sm:$0xff]
        %v1092 = vld [vmem:[%s1011 + $0x80] sm:$0xff]
        %v1093 = vld [vmem:[%s1011 + $0x98] sm:$0xff]
        %v1094 = vld [vmem:[%s1011 + $0xb0] sm:$0xff]
        %v1095 = vperm.slane %v301, 7
        %v1096 = vmul.f32 %v1087, %v1095
        %v1097 = vmul.f32 %v1088, %v1095
        %v1098 = vmul.f32 %v1089, %v1095
        %v1099 = vmul.f32 %v1090, %v1095
        %v1100 = vmul.f32 %v1091, %v1095
        %v1101 = vmul.f32 %v1092, %v1095
        %v1102 = vmul.f32 %v1093, %v1095
        %v1103 = vmul.f32 %v1094, %v1095
        %v1104 = vadd.f32 %v1079, %v1096
        %v1105 = vadd.f32 %v1080, %v1097
        %v1106 = vadd.f32 %v1081, %v1098
        %v1107 = vadd.f32 %v1082, %v1099
        %v1108 = vadd.f32 %v1083, %v1100
        %v1109 = vadd.f32 %v1084, %v1101
        %v1110 = vadd.f32 %v1085, %v1102
        %v1111 = vadd.f32 %v1086, %v1103
        %v1112 = vld [vmem:[%s1011 + $0x9] sm:$0xff]
        %v1113 = vld [vmem:[%s1011 + $0x21] sm:$0xff]
        %v1114 = vld [vmem:[%s1011 + $0x39] sm:$0xff]
        %v1115 = vld [vmem:[%s1011 + $0x51] sm:$0xff]
        %v1116 = vld [vmem:[%s1011 + $0x69] sm:$0xff]
        %v1117 = vld [vmem:[%s1011 + $0x81] sm:$0xff]
        %v1118 = vld [vmem:[%s1011 + $0x99] sm:$0xff]
        %v1119 = vld [vmem:[%s1011 + $0xb1] sm:$0xff]
        %v1120 = vperm.slane %v302, 0
        %v1121 = vmul.f32 %v1112, %v1120
        %v1122 = vmul.f32 %v1113, %v1120
        %v1123 = vmul.f32 %v1114, %v1120
        %v1124 = vmul.f32 %v1115, %v1120
        %v1125 = vmul.f32 %v1116, %v1120
        %v1126 = vmul.f32 %v1117, %v1120
        %v1127 = vmul.f32 %v1118, %v1120
        %v1128 = vmul.f32 %v1119, %v1120
        %v1129 = vadd.f32 %v1104, %v1121
        %v1130 = vadd.f32 %v1105, %v1122
        %v1131 = vadd.f32 %v1106, %v1123
        %v1132 = vadd.f32 %v1107, %v1124
        %v1133 = vadd.f32 %v1108, %v1125
        %v1134 = vadd.f32 %v1109, %v1126
        %v1135 = vadd.f32 %v1110, %v1127
        %v1136 = vadd.f32 %v1111, %v1128
        %v1137 = vld [vmem:[%s1011 + $0xa] sm:$0xff]
        %v1138 = vld [vmem:[%s1011 + $0x22] sm:$0xff]
        %v1139 = vld [vmem:[%s1011 + $0x3a] sm:$0xff]
        %v1140 = vld [vmem:[%s1011 + $0x52] sm:$0xff]
        %v1141 = vld [vmem:[%s1011 + $0x6a] sm:$0xff]
        %v1142 = vld [vmem:[%s1011 + $0x82] sm:$0xff]
        %v1143 = vld [vmem:[%s1011 + $0x9a] sm:$0xff]
        %v1144 = vld [vmem:[%s1011 + $0xb2] sm:$0xff]
        %v1145 = vperm.slane %v302, 1
        %v1146 = vmul.f32 %v1137, %v1145
        %v1147 = vmul.f32 %v1138, %v1145
        %v1148 = vmul.f32 %v1139, %v1145
        %v1149 = vmul.f32 %v1140, %v1145
        %v1150 = vmul.f32 %v1141, %v1145
        %v1151 = vmul.f32 %v1142, %v1145
        %v1152 = vmul.f32 %v1143, %v1145
        %v1153 = vmul.f32 %v1144, %v1145
        %v1154 = vadd.f32 %v1129, %v1146
        %v1155 = vadd.f32 %v1130, %v1147
        %v1156 = vadd.f32 %v1131, %v1148
        %v1157 = vadd.f32 %v1132, %v1149
        %v1158 = vadd.f32 %v1133, %v1150
        %v1159 = vadd.f32 %v1134, %v1151
        %v1160 = vadd.f32 %v1135, %v1152
        %v1161 = vadd.f32 %v1136, %v1153
        %v1162 = vld [vmem:[%s1011 + $0xb] sm:$0xff]
        %v1163 = vld [vmem:[%s1011 + $0x23] sm:$0xff]
        %v1164 = vld [vmem:[%s1011 + $0x3b] sm:$0xff]
        %v1165 = vld [vmem:[%s1011 + $0x53] sm:$0xff]
        %v1166 = vld [vmem:[%s1011 + $0x6b] sm:$0xff]
        %v1167 = vld [vmem:[%s1011 + $0x83] sm:$0xff]
        %v1168 = vld [vmem:[%s1011 + $0x9b] sm:$0xff]
        %v1169 = vld [vmem:[%s1011 + $0xb3] sm:$0xff]
        %v1170 = vperm.slane %v302, 2
        %v1171 = vmul.f32 %v1162, %v1170
        %v1172 = vmul.f32 %v1163, %v1170
        %v1173 = vmul.f32 %v1164, %v1170
        %v1174 = vmul.f32 %v1165, %v1170
        %v1175 = vmul.f32 %v1166, %v1170
        %v1176 = vmul.f32 %v1167, %v1170
        %v1177 = vmul.f32 %v1168, %v1170
        %v1178 = vmul.f32 %v1169, %v1170
        %v1179 = vadd.f32 %v1154, %v1171
        %v1180 = vadd.f32 %v1155, %v1172
        %v1181 = vadd.f32 %v1156, %v1173
        %v1182 = vadd.f32 %v1157, %v1174
        %v1183 = vadd.f32 %v1158, %v1175
        %v1184 = vadd.f32 %v1159, %v1176
        %v1185 = vadd.f32 %v1160, %v1177
        %v1186 = vadd.f32 %v1161, %v1178
        %s1187 = scalar_lea.vmem [#allocation2], 120
        %v1188 = vld [vmem:[%s1187 + $0x5] sm:$0xff]
        %v1189 = vld [vmem:[%s1187 + $0x1d] sm:$0xff]
        %v1190 = vld [vmem:[%s1187 + $0x35] sm:$0xff]
        %v1191 = vld [vmem:[%s1187 + $0x4d] sm:$0xff]
        %v1192 = vld [vmem:[%s1187 + $0x65] sm:$0xff]
        %v1193 = vld [vmem:[%s1187 + $0x7d] sm:$0xff]
        %v1194 = vld [vmem:[%s1187 + $0x95] sm:$0xff]
        %v1195 = vld [vmem:[%s1187 + $0xad] sm:$0xff]
        %v1196 = vperm.slane %v302, 3
        %v1197 = vmul.f32 %v1188, %v1196
        %v1198 = vmul.f32 %v1189, %v1196
        %v1199 = vmul.f32 %v1190, %v1196
        %v1200 = vmul.f32 %v1191, %v1196
        %v1201 = vmul.f32 %v1192, %v1196
        %v1202 = vmul.f32 %v1193, %v1196
        %v1203 = vmul.f32 %v1194, %v1196
        %v1204 = vmul.f32 %v1195, %v1196
        %v1205 = vadd.f32 %v1179, %v1197
        %v1206 = vadd.f32 %v1180, %v1198
        %v1207 = vadd.f32 %v1181, %v1199
        %v1208 = vadd.f32 %v1182, %v1200
        %v1209 = vadd.f32 %v1183, %v1201
        %v1210 = vadd.f32 %v1184, %v1202
        %v1211 = vadd.f32 %v1185, %v1203
        %v1212 = vadd.f32 %v1186, %v1204
        %v1213 = vld [vmem:[%s1187 + $0x6] sm:$0xff]
        %v1214 = vld [vmem:[%s1187 + $0x1e] sm:$0xff]
        %v1215 = vld [vmem:[%s1187 + $0x36] sm:$0xff]
        %v1216 = vld [vmem:[%s1187 + $0x4e] sm:$0xff]
        %v1217 = vld [vmem:[%s1187 + $0x66] sm:$0xff]
        %v1218 = vld [vmem:[%s1187 + $0x7e] sm:$0xff]
        %v1219 = vld [vmem:[%s1187 + $0x96] sm:$0xff]
        %v1220 = vld [vmem:[%s1187 + $0xae] sm:$0xff]
        %v1221 = vperm.slane %v302, 4
        %v1222 = vmul.f32 %v1213, %v1221
        %v1223 = vmul.f32 %v1214, %v1221
        %v1224 = vmul.f32 %v1215, %v1221
        %v1225 = vmul.f32 %v1216, %v1221
        %v1226 = vmul.f32 %v1217, %v1221
        %v1227 = vmul.f32 %v1218, %v1221
        %v1228 = vmul.f32 %v1219, %v1221
        %v1229 = vmul.f32 %v1220, %v1221
        %v1230 = vadd.f32 %v1205, %v1222
        %v1231 = vadd.f32 %v1206, %v1223
        %v1232 = vadd.f32 %v1207, %v1224
        %v1233 = vadd.f32 %v1208, %v1225
        %v1234 = vadd.f32 %v1209, %v1226
        %v1235 = vadd.f32 %v1210, %v1227
        %v1236 = vadd.f32 %v1211, %v1228
        %v1237 = vadd.f32 %v1212, %v1229
        %v1238 = vld [vmem:[%s1187 + $0x7] sm:$0xff]
        %v1239 = vld [vmem:[%s1187 + $0x1f] sm:$0xff]
        %v1240 = vld [vmem:[%s1187 + $0x37] sm:$0xff]
        %v1241 = vld [vmem:[%s1187 + $0x4f] sm:$0xff]
        %v1242 = vld [vmem:[%s1187 + $0x67] sm:$0xff]
        %v1243 = vld [vmem:[%s1187 + $0x7f] sm:$0xff]
        %v1244 = vld [vmem:[%s1187 + $0x97] sm:$0xff]
        %v1245 = vld [vmem:[%s1187 + $0xaf] sm:$0xff]
        %v1246 = vperm.slane %v302, 5
        %v1247 = vmul.f32 %v1238, %v1246
        %v1248 = vmul.f32 %v1239, %v1246
        %v1249 = vmul.f32 %v1240, %v1246
        %v1250 = vmul.f32 %v1241, %v1246
        %v1251 = vmul.f32 %v1242, %v1246
        %v1252 = vmul.f32 %v1243, %v1246
        %v1253 = vmul.f32 %v1244, %v1246
        %v1254 = vmul.f32 %v1245, %v1246
        %v1255 = vadd.f32 %v1230, %v1247
        %v1256 = vadd.f32 %v1231, %v1248
        %v1257 = vadd.f32 %v1232, %v1249
        %v1258 = vadd.f32 %v1233, %v1250
        %v1259 = vadd.f32 %v1234, %v1251
        %v1260 = vadd.f32 %v1235, %v1252
        %v1261 = vadd.f32 %v1236, %v1253
        %v1262 = vadd.f32 %v1237, %v1254
        %v1263 = vld [vmem:[%s1187 + $0x8] sm:$0xff]
        %v1264 = vld [vmem:[%s1187 + $0x20] sm:$0xff]
        %v1265 = vld [vmem:[%s1187 + $0x38] sm:$0xff]
        %v1266 = vld [vmem:[%s1187 + $0x50] sm:$0xff]
        %v1267 = vld [vmem:[%s1187 + $0x68] sm:$0xff]
        %v1268 = vld [vmem:[%s1187 + $0x80] sm:$0xff]
        %v1269 = vld [vmem:[%s1187 + $0x98] sm:$0xff]
        %v1270 = vld [vmem:[%s1187 + $0xb0] sm:$0xff]
        %v1271 = vperm.slane %v302, 6
        %v1272 = vmul.f32 %v1263, %v1271
        %v1273 = vmul.f32 %v1264, %v1271
        %v1274 = vmul.f32 %v1265, %v1271
        %v1275 = vmul.f32 %v1266, %v1271
        %v1276 = vmul.f32 %v1267, %v1271
        %v1277 = vmul.f32 %v1268, %v1271
        %v1278 = vmul.f32 %v1269, %v1271
        %v1279 = vmul.f32 %v1270, %v1271
        %v1280 = vadd.f32 %v1255, %v1272
        %v1281 = vadd.f32 %v1256, %v1273
        %v1282 = vadd.f32 %v1257, %v1274
        %v1283 = vadd.f32 %v1258, %v1275
        %v1284 = vadd.f32 %v1259, %v1276
        %v1285 = vadd.f32 %v1260, %v1277
        %v1286 = vadd.f32 %v1261, %v1278
        %v1287 = vadd.f32 %v1262, %v1279
        %v1288 = vld [vmem:[%s1187 + $0x9] sm:$0xff]
        %v1289 = vld [vmem:[%s1187 + $0x21] sm:$0xff]
        %v1290 = vld [vmem:[%s1187 + $0x39] sm:$0xff]
        %v1291 = vld [vmem:[%s1187 + $0x51] sm:$0xff]
        %v1292 = vld [vmem:[%s1187 + $0x69] sm:$0xff]
        %v1293 = vld [vmem:[%s1187 + $0x81] sm:$0xff]
        %v1294 = vld [vmem:[%s1187 + $0x99] sm:$0xff]
        %v1295 = vld [vmem:[%s1187 + $0xb1] sm:$0xff]
        %v1296 = vperm.slane %v302, 7
        %v1297 = vmul.f32 %v1288, %v1296
        %v1298 = vmul.f32 %v1289, %v1296
        %v1299 = vmul.f32 %v1290, %v1296
        %v1300 = vmul.f32 %v1291, %v1296
        %v1301 = vmul.f32 %v1292, %v1296
        %v1302 = vmul.f32 %v1293, %v1296
        %v1303 = vmul.f32 %v1294, %v1296
        %v1304 = vmul.f32 %v1295, %v1296
        %v1305 = vadd.f32 %v1280, %v1297
        %v1306 = vadd.f32 %v1281, %v1298
        %v1307 = vadd.f32 %v1282, %v1299
        %v1308 = vadd.f32 %v1283, %v1300
        %v1309 = vadd.f32 %v1284, %v1301
        %v1310 = vadd.f32 %v1285, %v1302
        %v1311 = vadd.f32 %v1286, %v1303
        %v1312 = vadd.f32 %v1287, %v1304
        %v1313 = vld [vmem:[%s1187 + $0xa] sm:$0xff]
        %v1314 = vld [vmem:[%s1187 + $0x22] sm:$0xff]
        %v1315 = vld [vmem:[%s1187 + $0x3a] sm:$0xff]
        %v1316 = vld [vmem:[%s1187 + $0x52] sm:$0xff]
        %v1317 = vld [vmem:[%s1187 + $0x6a] sm:$0xff]
        %v1318 = vld [vmem:[%s1187 + $0x82] sm:$0xff]
        %v1319 = vld [vmem:[%s1187 + $0x9a] sm:$0xff]
        %v1320 = vld [vmem:[%s1187 + $0xb2] sm:$0xff]
        %v1321 = vperm.slane %v303, 0
        %v1322 = vmul.f32 %v1313, %v1321
        %v1323 = vmul.f32 %v1314, %v1321
        %v1324 = vmul.f32 %v1315, %v1321
        %v1325 = vmul.f32 %v1316, %v1321
        %v1326 = vmul.f32 %v1317, %v1321
        %v1327 = vmul.f32 %v1318, %v1321
        %v1328 = vmul.f32 %v1319, %v1321
        %v1329 = vmul.f32 %v1320, %v1321
        %v1330 = vadd.f32 %v1305, %v1322
        %v1331 = vadd.f32 %v1306, %v1323
        %v1332 = vadd.f32 %v1307, %v1324
        %v1333 = vadd.f32 %v1308, %v1325
        %v1334 = vadd.f32 %v1309, %v1326
        %v1335 = vadd.f32 %v1310, %v1327
        %v1336 = vadd.f32 %v1311, %v1328
        %v1337 = vadd.f32 %v1312, %v1329
        %v1338 = vld [vmem:[%s1187 + $0xb] sm:$0xff]
        %v1339 = vld [vmem:[%s1187 + $0x23] sm:$0xff]
        %v1340 = vld [vmem:[%s1187 + $0x3b] sm:$0xff]
        %v1341 = vld [vmem:[%s1187 + $0x53] sm:$0xff]
        %v1342 = vld [vmem:[%s1187 + $0x6b] sm:$0xff]
        %v1343 = vld [vmem:[%s1187 + $0x83] sm:$0xff]
        %v1344 = vld [vmem:[%s1187 + $0x9b] sm:$0xff]
        %v1345 = vld [vmem:[%s1187 + $0xb3] sm:$0xff]
        %v1346 = vperm.slane %v303, 1
        %v1347 = vmul.f32 %v1338, %v1346
        %v1348 = vmul.f32 %v1339, %v1346
        %v1349 = vmul.f32 %v1340, %v1346
        %v1350 = vmul.f32 %v1341, %v1346
        %v1351 = vmul.f32 %v1342, %v1346
        %v1352 = vmul.f32 %v1343, %v1346
        %v1353 = vmul.f32 %v1344, %v1346
        %v1354 = vmul.f32 %v1345, %v1346
        %v1355 = vadd.f32 %v1330, %v1347
        %v1356 = vadd.f32 %v1331, %v1348
        %v1357 = vadd.f32 %v1332, %v1349
        %v1358 = vadd.f32 %v1333, %v1350
        %v1359 = vadd.f32 %v1334, %v1351
        %v1360 = vadd.f32 %v1335, %v1352
        %v1361 = vadd.f32 %v1336, %v1353
        %v1362 = vadd.f32 %v1337, %v1354
        %s1363 = scalar_lea.vmem [#allocation2], 144
        %v1364 = vld [vmem:[%s1363 + $0x5] sm:$0xff]
        %v1365 = vld [vmem:[%s1363 + $0x1d] sm:$0xff]
        %v1366 = vld [vmem:[%s1363 + $0x35] sm:$0xff]
        %v1367 = vld [vmem:[%s1363 + $0x4d] sm:$0xff]
        %v1368 = vld [vmem:[%s1363 + $0x65] sm:$0xff]
        %v1369 = vld [vmem:[%s1363 + $0x7d] sm:$0xff]
        %v1370 = vld [vmem:[%s1363 + $0x95] sm:$0xff]
        %v1371 = vld [vmem:[%s1363 + $0xad] sm:$0xff]
        %v1372 = vperm.slane %v303, 2
        %v1373 = vmul.f32 %v1364, %v1372
        %v1374 = vmul.f32 %v1365, %v1372
        %v1375 = vmul.f32 %v1366, %v1372
        %v1376 = vmul.f32 %v1367, %v1372
        %v1377 = vmul.f32 %v1368, %v1372
        %v1378 = vmul.f32 %v1369, %v1372
        %v1379 = vmul.f32 %v1370, %v1372
        %v1380 = vmul.f32 %v1371, %v1372
        %v1381 = vadd.f32 %v1355, %v1373
        %v1382 = vadd.f32 %v1356, %v1374
        %v1383 = vadd.f32 %v1357, %v1375
        %v1384 = vadd.f32 %v1358, %v1376
        %v1385 = vadd.f32 %v1359, %v1377
        %v1386 = vadd.f32 %v1360, %v1378
        %v1387 = vadd.f32 %v1361, %v1379
        %v1388 = vadd.f32 %v1362, %v1380
        %v1389 = vld [vmem:[%s1363 + $0x6] sm:$0xff]
        %v1390 = vld [vmem:[%s1363 + $0x1e] sm:$0xff]
        %v1391 = vld [vmem:[%s1363 + $0x36] sm:$0xff]
        %v1392 = vld [vmem:[%s1363 + $0x4e] sm:$0xff]
        %v1393 = vld [vmem:[%s1363 + $0x66] sm:$0xff]
        %v1394 = vld [vmem:[%s1363 + $0x7e] sm:$0xff]
        %v1395 = vld [vmem:[%s1363 + $0x96] sm:$0xff]
        %v1396 = vld [vmem:[%s1363 + $0xae] sm:$0xff]
        %v1397 = vperm.slane %v303, 3
        %v1398 = vmul.f32 %v1389, %v1397
        %v1399 = vmul.f32 %v1390, %v1397
        %v1400 = vmul.f32 %v1391, %v1397
        %v1401 = vmul.f32 %v1392, %v1397
        %v1402 = vmul.f32 %v1393, %v1397
        %v1403 = vmul.f32 %v1394, %v1397
        %v1404 = vmul.f32 %v1395, %v1397
        %v1405 = vmul.f32 %v1396, %v1397
        %v1406 = vadd.f32 %v1381, %v1398
        %v1407 = vadd.f32 %v1382, %v1399
        %v1408 = vadd.f32 %v1383, %v1400
        %v1409 = vadd.f32 %v1384, %v1401
        %v1410 = vadd.f32 %v1385, %v1402
        %v1411 = vadd.f32 %v1386, %v1403
        %v1412 = vadd.f32 %v1387, %v1404
        %v1413 = vadd.f32 %v1388, %v1405
        %v1414 = vld [vmem:[%s1363 + $0x7] sm:$0xff]
        %v1415 = vld [vmem:[%s1363 + $0x1f] sm:$0xff]
        %v1416 = vld [vmem:[%s1363 + $0x37] sm:$0xff]
        %v1417 = vld [vmem:[%s1363 + $0x4f] sm:$0xff]
        %v1418 = vld [vmem:[%s1363 + $0x67] sm:$0xff]
        %v1419 = vld [vmem:[%s1363 + $0x7f] sm:$0xff]
        %v1420 = vld [vmem:[%s1363 + $0x97] sm:$0xff]
        %v1421 = vld [vmem:[%s1363 + $0xaf] sm:$0xff]
        %v1422 = vperm.slane %v303, 4
        %v1423 = vmul.f32 %v1414, %v1422
        %v1424 = vmul.f32 %v1415, %v1422
        %v1425 = vmul.f32 %v1416, %v1422
        %v1426 = vmul.f32 %v1417, %v1422
        %v1427 = vmul.f32 %v1418, %v1422
        %v1428 = vmul.f32 %v1419, %v1422
        %v1429 = vmul.f32 %v1420, %v1422
        %v1430 = vmul.f32 %v1421, %v1422
        %v1431 = vadd.f32 %v1406, %v1423
        %v1432 = vadd.f32 %v1407, %v1424
        %v1433 = vadd.f32 %v1408, %v1425
        %v1434 = vadd.f32 %v1409, %v1426
        %v1435 = vadd.f32 %v1410, %v1427
        %v1436 = vadd.f32 %v1411, %v1428
        %v1437 = vadd.f32 %v1412, %v1429
        %v1438 = vadd.f32 %v1413, %v1430
        %v1439 = vld [vmem:[%s1363 + $0x8] sm:$0xff]
        %v1440 = vld [vmem:[%s1363 + $0x20] sm:$0xff]
        %v1441 = vld [vmem:[%s1363 + $0x38] sm:$0xff]
        %v1442 = vld [vmem:[%s1363 + $0x50] sm:$0xff]
        %v1443 = vld [vmem:[%s1363 + $0x68] sm:$0xff]
        %v1444 = vld [vmem:[%s1363 + $0x80] sm:$0xff]
        %v1445 = vld [vmem:[%s1363 + $0x98] sm:$0xff]
        %v1446 = vld [vmem:[%s1363 + $0xb0] sm:$0xff]
        %v1447 = vperm.slane %v303, 5
        %v1448 = vmul.f32 %v1439, %v1447
        %v1449 = vmul.f32 %v1440, %v1447
        %v1450 = vmul.f32 %v1441, %v1447
        %v1451 = vmul.f32 %v1442, %v1447
        %v1452 = vmul.f32 %v1443, %v1447
        %v1453 = vmul.f32 %v1444, %v1447
        %v1454 = vmul.f32 %v1445, %v1447
        %v1455 = vmul.f32 %v1446, %v1447
        %v1456 = vadd.f32 %v1431, %v1448
        %v1457 = vadd.f32 %v1432, %v1449
        %v1458 = vadd.f32 %v1433, %v1450
        %v1459 = vadd.f32 %v1434, %v1451
        %v1460 = vadd.f32 %v1435, %v1452
        %v1461 = vadd.f32 %v1436, %v1453
        %v1462 = vadd.f32 %v1437, %v1454
        %v1463 = vadd.f32 %v1438, %v1455
        %v1464 = vld [vmem:[%s1363 + $0x9] sm:$0xff]
        %v1465 = vld [vmem:[%s1363 + $0x21] sm:$0xff]
        %v1466 = vld [vmem:[%s1363 + $0x39] sm:$0xff]
        %v1467 = vld [vmem:[%s1363 + $0x51] sm:$0xff]
        %v1468 = vld [vmem:[%s1363 + $0x69] sm:$0xff]
        %v1469 = vld [vmem:[%s1363 + $0x81] sm:$0xff]
        %v1470 = vld [vmem:[%s1363 + $0x99] sm:$0xff]
        %v1471 = vld [vmem:[%s1363 + $0xb1] sm:$0xff]
        %v1472 = vperm.slane %v303, 6
        %v1473 = vmul.f32 %v1464, %v1472
        %v1474 = vmul.f32 %v1465, %v1472
        %v1475 = vmul.f32 %v1466, %v1472
        %v1476 = vmul.f32 %v1467, %v1472
        %v1477 = vmul.f32 %v1468, %v1472
        %v1478 = vmul.f32 %v1469, %v1472
        %v1479 = vmul.f32 %v1470, %v1472
        %v1480 = vmul.f32 %v1471, %v1472
        %v1481 = vadd.f32 %v1456, %v1473
        %v1482 = vadd.f32 %v1457, %v1474
        %v1483 = vadd.f32 %v1458, %v1475
        %v1484 = vadd.f32 %v1459, %v1476
        %v1485 = vadd.f32 %v1460, %v1477
        %v1486 = vadd.f32 %v1461, %v1478
        %v1487 = vadd.f32 %v1462, %v1479
        %v1488 = vadd.f32 %v1463, %v1480
        %v1489 = vld [vmem:[%s1363 + $0xa] sm:$0xff]
        %v1490 = vld [vmem:[%s1363 + $0x22] sm:$0xff]
        %v1491 = vld [vmem:[%s1363 + $0x3a] sm:$0xff]
        %v1492 = vld [vmem:[%s1363 + $0x52] sm:$0xff]
        %v1493 = vld [vmem:[%s1363 + $0x6a] sm:$0xff]
        %v1494 = vld [vmem:[%s1363 + $0x82] sm:$0xff]
        %v1495 = vld [vmem:[%s1363 + $0x9a] sm:$0xff]
        %v1496 = vld [vmem:[%s1363 + $0xb2] sm:$0xff]
        %v1497 = vperm.slane %v303, 7
        %v1498 = vmul.f32 %v1489, %v1497
        %v1499 = vmul.f32 %v1490, %v1497
        %v1500 = vmul.f32 %v1491, %v1497
        %v1501 = vmul.f32 %v1492, %v1497
        %v1502 = vmul.f32 %v1493, %v1497
        %v1503 = vmul.f32 %v1494, %v1497
        %v1504 = vmul.f32 %v1495, %v1497
        %v1505 = vmul.f32 %v1496, %v1497
        %v1506 = vadd.f32 %v1481, %v1498
        %v1507 = vadd.f32 %v1482, %v1499
        %v1508 = vadd.f32 %v1483, %v1500
        %v1509 = vadd.f32 %v1484, %v1501
        %v1510 = vadd.f32 %v1485, %v1502
        %v1511 = vadd.f32 %v1486, %v1503
        %v1512 = vadd.f32 %v1487, %v1504
        %v1513 = vadd.f32 %v1488, %v1505
        %v1514 = vld [vmem:[%s1363 + $0xb] sm:$0xff]
        %v1515 = vld [vmem:[%s1363 + $0x23] sm:$0xff]
        %v1516 = vld [vmem:[%s1363 + $0x3b] sm:$0xff]
        %v1517 = vld [vmem:[%s1363 + $0x53] sm:$0xff]
        %v1518 = vld [vmem:[%s1363 + $0x6b] sm:$0xff]
        %v1519 = vld [vmem:[%s1363 + $0x83] sm:$0xff]
        %v1520 = vld [vmem:[%s1363 + $0x9b] sm:$0xff]
        %v1521 = vld [vmem:[%s1363 + $0xb3] sm:$0xff]
        %v1522 = vperm.slane %v304, 0
        %v1523 = vmul.f32 %v1514, %v1522
        %v1524 = vmul.f32 %v1515, %v1522
        %v1525 = vmul.f32 %v1516, %v1522
        %v1526 = vmul.f32 %v1517, %v1522
        %v1527 = vmul.f32 %v1518, %v1522
        %v1528 = vmul.f32 %v1519, %v1522
        %v1529 = vmul.f32 %v1520, %v1522
        %v1530 = vmul.f32 %v1521, %v1522
        %v1531 = vadd.f32 %v1506, %v1523
        %v1532 = vadd.f32 %v1507, %v1524
        %v1533 = vadd.f32 %v1508, %v1525
        %v1534 = vadd.f32 %v1509, %v1526
        %v1535 = vadd.f32 %v1510, %v1527
        %v1536 = vadd.f32 %v1511, %v1528
        %v1537 = vadd.f32 %v1512, %v1529
        %v1538 = vadd.f32 %v1513, %v1530
        %1539 = vst [vmem:[%s242] sm:$0xff] %v1531
        %1540 = vst [vmem:[%s242 + $0x8] sm:$0xff] %v1532
        %1541 = vst [vmem:[%s242 + $0x10] sm:$0xff] %v1533
        %1542 = vst [vmem:[%s242 + $0x18] sm:$0xff] %v1534
        %1543 = vst [vmem:[%s242 + $0x20] sm:$0xff] %v1535
        %1544 = vst [vmem:[%s242 + $0x28] sm:$0xff] %v1536
        %1545 = vst [vmem:[%s242 + $0x30] sm:$0xff] %v1537
        %1546 = vst [vmem:[%s242 + $0x38] sm:$0xff] %v1538
        %s1547 = sand.u32 %s123, 1
        %s1548 = scalar_lea.sflag [#allocation5], %s1547
        %s1549 = sand.u32 %s123, 1
        %s1550 = smul.addr %s1549, 64
        %s1551 = scalar_lea.vmem [#allocation8], %s1550
        // Predicated region
        $region41: #{tpu_custom_call.1} parent=31 // pred_check
          %p1552 = pneg %p133
        $region42: #{tpu_custom_call.1} parent=31 // pred_check_branch
          %1554 = sbr.rel (%p1552) target = $region44
        $region43: #{tpu_custom_call.1} parent=31 // pred_region
          %1556 = vsyncadd %s1548, 0
          %s1557 = smul.addr %s25, 8
          %s1558 = sadd.s32 %s26, %s1557
          %s1559 = smul.addr %s1558, 8
          %s1560 = scalar_lea.hbm %s3, %s1559
          %s1561 = sshll.u32 %s1551, 4
          %s1562 = int_to_ptr.vmem [resolvable:$true] %s1561
          %s1563 = sshll.u32 %s1560, 4
          %s1564 = int_to_ptr.hbm [resolvable:$true] %s1563
          %1569 = dma.vmem_to_hbm [thread:$0]  %s1562, 1024, %s1564, %s1548, 128, 128, 8
        $region44: #{tpu_custom_call.1} parent=31 // pred_fallthru
          _
      $region32: #{tpu_custom_call.1} parent=5 // pred_fallthru
        _
      %p1570 = scmp.le.s32.totalorder 2, %s16
      // Predicated region
      $region45: #{tpu_custom_call.1} parent=5 // pred_check
        %p1571 = pneg %p1570
      $region46: #{tpu_custom_call.1} parent=5 // pred_check_branch
        %1573 = sbr.rel (%p1571) target = $region48
      $region47: #{tpu_custom_call.1} parent=5 // pred_region
        %s1574 = ssub.s32 %s16, 2
        // Predicated region
        $region49: #{tpu_custom_call.1} parent=47 // pred_check
          %p1575 = pneg %p139
        $region50: #{tpu_custom_call.1} parent=47 // pred_check_branch
          %1577 = sbr.rel (%p1575) target = $region52
        $region51: #{tpu_custom_call.1} parent=47 // pred_region
          %s1578 = sand.u32 %s124, 1
          %s1579 = scalar_lea.sflag [#allocation5], %s1578
          %s1580 = sand.u32 %s124, 1
          %s1581 = smul.addr %s1580, 64
          %s1582 = scalar_lea.vmem [#allocation8], %s1581
          %1584 = dma.done %s1579, 1024
        $region52: #{tpu_custom_call.1} parent=47 // pred_fallthru
          _
      $region48: #{tpu_custom_call.1} parent=5 // pred_fallthru
        _
    $region6: #{tpu_custom_call.1} parent=1 // loop_footer
      %s20 = sadd.s32 1, %s16
    $region7: #{tpu_custom_call.1} parent=1 // loop_footer_branch
      %15 = sbr.rel target = $region3
    $region8: #{tpu_custom_call.1} parent=1 // loop_exit
      _
    %1585 = vsyncpa [#allocation4], 1
    %s1586 = scalar_lea.sflag [#allocation4], 1
    %1587 = vsyncpa %s1586, 1
    %1588 = vsyncpa [#allocation7], 1
    %1589 = vsyncpa [#allocation5], 1
    %s1590 = scalar_lea.sflag [#allocation5], 1
    %1591 = vsyncpa %s1590, 1

</llo_original>
